<compile_context>
chip_gen: v7x
topology: tpu7x:2x2x1
jax: 0.10.0
libtpu: 0.0.40
codegen_flags: <defaults>
</compile_context>

<pallas_src>
import functools
import math

import jax
import jax.numpy as jnp
from jax import lax
from jax.experimental import pallas as pl
from jax.experimental.pallas import tpu as pltpu


def _round_up(x, m):
    return (x + m - 1) // m * m


def _gat_kernel(h_ref, w_ref, asrc_ref, adst_ref, bias_ref, out_ref, *attn_refs,
                n, f_in, f_out, n_head, b_tile, approx_recip):
    # h_ref   : (b_tile, n, f_in)
    # w_ref   : (f_in, n_head*f_out)     head-fused projection
    # asrc_ref: (n_head*f_out, n_head)   block-diagonal packed a_src (transposed)
    # adst_ref: (n_head, n_head*f_out)   block-diagonal packed a_dst
    # bias_ref: (1, n_head*f_out)        bias tiled per head
    # out_ref : (b_tile, n, n_head*f_out)
    # attn_ref: (b_tile, n, n_head*n)    only present when return_attn
    attn_ref = attn_refs[0] if attn_refs else None
    F = n_head * f_out
    M = b_tile * n
    mxu_dtype = h_ref.dtype            # bf16 when use_bf16_matmul, else f32

    # Head-fused projection: one lane-dense MXU matmul (N = n_head*f_out lanes).
    h = h_ref[...].reshape(M, f_in)
    hp = jnp.dot(h, w_ref[...], preferred_element_type=jnp.float32)   # (M, F) f32

    # a_src scores for all heads at once: (M, n_head).
    src = jnp.dot(hp, asrc_ref[...], preferred_element_type=jnp.float32)

    hp3 = hp.reshape(b_tile, n, F)
    src3 = src.reshape(b_tile, n, n_head)
    adst = adst_ref[...]
    bias_row = bias_ref[...]

    aligned_attn = (attn_ref is not None) and (n % 128 == 0)

    for b in range(b_tile):                         # static unroll (b_tile small)
        hp_b = hp3[b]                               # (n, F)
        src_b = src3[b]                             # (n, n_head)

        # a_dst scores in head-major row layout (n_head, n); per batch element
        # from a clean leading-axis slice (no misaligned cross-lane extracts).
        dst_b = lax.dot_general(
            adst, hp_b, dimension_numbers=(((1,), (1,)), ((), ())),
            preferred_element_type=jnp.float32)     # (n_head, n)

        # Fused logits for all heads: logits[i, hd, j] = src[i, hd] + dst[hd, j]
        logits = src_b[:, :, None] + dst_b[None, :, :]          # (n, n_head, n)
        # LeakyReLU(0.2) + numerically stable softmax over keys, all heads in
        # one pass (single where/exp/max/sum instead of n_head unrolled copies).
        logits = jnp.where(logits > 0, logits, 0.2 * logits)
        logits = logits - jnp.max(logits, axis=-1, keepdims=True)
        e = jnp.exp(logits)
        denom = jnp.sum(e, axis=-1, keepdims=True)
        # exact divide when attn is returned (rows sum to 1); EUP approx otherwise
        p = e * pl.reciprocal(denom, approx=approx_recip)       # (n, n_head, n)

        out_heads = []
        attn_heads = []
        for hd in range(n_head):                    # static unroll, matmuls only
            p_hd = p[:, hd, :]                      # (n, n)
            if aligned_attn:
                # 128-aligned lane offset -> unmasked full-lane stores per head.
                attn_ref[b, :, hd * n:(hd + 1) * n] = p_hd.astype(attn_ref.dtype)
            elif attn_ref is not None:
                attn_heads.append(p_hd)
            # attn @ h' for this head (MXU), f32 accumulation.
            out_heads.append(jnp.dot(
                p_hd.astype(mxu_dtype),
                hp_b[:, hd * f_out:(hd + 1) * f_out].astype(mxu_dtype),
                preferred_element_type=jnp.float32))            # (n, f_out)

        if attn_ref is not None and not aligned_attn:
            # n < 128: single lane-dense slab store instead of masked sub-stores.
            attn_ref[b] = jnp.concatenate(attn_heads, axis=-1).astype(attn_ref.dtype)

        # One lane-dense out store (all heads concatenated on lanes) + bias.
        out_ref[b] = (jnp.concatenate(out_heads, axis=-1)
                      + bias_row).astype(out_ref.dtype)

    # TODO(synk): attn_dropout is eval-mode (identity); training-mode dropout
    # would use pltpu.prng_seed + pltpu.stateful_bernoulli on p.
    # TODO(synk): for n >~ 1K the (n, n_head, n) logits tile should be
    # flash-tiled over key blocks (running max/sum scratch) and a query-block
    # grid axis added so the tiles stay inside v7x's 64 MiB VMEM.


def _step_vmem_bytes(b_tile, n, f_in, f_out, n_head, in_itemsize, attn_itemsize,
                     return_attn):
    """Rough double-buffered VMEM footprint of one grid step's pipeline blocks."""
    F = n_head * f_out
    n_pad = _round_up(n, 8)
    blocks = (
        b_tile * n_pad * _round_up(f_in, 128) * in_itemsize      # h (padded f_in)
        + _round_up(f_in, 8) * _round_up(F, 128) * in_itemsize   # w_fused
        + _round_up(F, 8) * 128 * 4                              # asrc_pack
        + 8 * _round_up(F, 128) * 4                              # adst_pack
        + 8 * _round_up(F, 128) * 4                              # bias_row
        + b_tile * n_pad * _round_up(F, 128) * 4                 # out slab
    )
    if return_attn:
        blocks += b_tile * n_pad * _round_up(n_head * n, 128) * attn_itemsize
    return 2 * blocks                                            # double-buffered


def batch_multi_head_graph_attention(h, w, a_src, a_dst, bias=None, *,
                                     b_tile=None, return_attn=True,
                                     attn_dtype=jnp.float32,
                                     use_bf16_matmul=False):
    """h: (bs, n, f_in); w: (n_head, f_in, f_out); a_*: (n_head, f_out, 1);
    bias: (f_out,) or None.  Returns (out, attn) matching the PyTorch module
    (out: (bs, n_head, n, f_out), attn: (bs, n_head, n, n)), or just `out`
    when return_attn=False (skips all attn compute/VMEM/HBM writeback)."""
    bs, n, f_in = h.shape
    n_head, _, f_out = w.shape
    F = n_head * f_out

    in_dtype = jnp.bfloat16 if use_bf16_matmul else jnp.float32
    in_itemsize = jnp.dtype(in_dtype).itemsize
    attn_itemsize = jnp.dtype(attn_dtype).itemsize

    # ---- batch-tile selection: fill the MXU M dim, keep >= 2 grid steps
    # (v7x has two TensorCores), stay inside a ~24 MiB pipeline budget. ----
    if b_tile is None:
        divisors = [d for d in range(1, bs + 1) if bs % d == 0]
        cands = [d for d in divisors if bs // d >= 2] or [bs]
        fitting = [d for d in cands
                   if _step_vmem_bytes(d, n, f_in, f_out, n_head, in_itemsize,
                                       attn_itemsize, return_attn) <= 24 * 2**20]
        cands = fitting or [cands[0]]
        b_tile = next((d for d in cands if d * n >= 256), cands[-1])
    assert bs % b_tile == 0, "b_tile must divide batch size"

    # ---- head-fused parameter packing (done once, outside the kernel) ----
    if bias is None:
        bias = jnp.zeros((f_out,), jnp.float32)
    w_fused = jnp.transpose(w, (1, 0, 2)).reshape(f_in, F).astype(in_dtype)
    eye = jnp.eye(n_head, dtype=jnp.float32)
    a_src_sq = a_src[..., 0].astype(jnp.float32)                 # (n_head, f_out)
    a_dst_sq = a_dst[..., 0].astype(jnp.float32)
    # asrc_pack[h*f_out+o, h'] = a_src[h, o] * (h == h')
    asrc_pack = (a_src_sq[:, :, None] * eye[:, None, :]).reshape(F, n_head)
    # adst_pack[h, h'*f_out+o] = a_dst[h, o] * (h == h')
    adst_pack = (eye[:, :, None] * a_dst_sq[:, None, :]).reshape(n_head, F)
    bias_row = jnp.tile(bias.reshape(1, f_out).astype(jnp.float32), (1, n_head))
    h_in = h.astype(in_dtype)

    kernel = functools.partial(
        _gat_kernel, n=n, f_in=f_in, f_out=f_out, n_head=n_head, b_tile=b_tile,
        approx_recip=not return_attn)

    out_shapes = [jax.ShapeDtypeStruct((bs, n, F), jnp.float32)]
    out_specs = [pl.BlockSpec((b_tile, n, F), lambda b: (b, 0, 0))]
    if return_attn:
        out_shapes.append(jax.ShapeDtypeStruct((bs, n, n_head * n), attn_dtype))
        out_specs.append(pl.BlockSpec((b_tile, n, n_head * n), lambda b: (b, 0, 0)))

    step_bytes = _step_vmem_bytes(b_tile, n, f_in, f_out, n_head, in_itemsize,
                                  attn_itemsize, return_attn)
    # headroom for the fused (n, n_head, n) softmax temporaries
    scratch_bytes = 3 * n * _round_up(n_head, 8) * _round_up(n, 128) * 4
    vmem_limit = int(min(64 * 2**20,
                         max(32 * 2**20, step_bytes + scratch_bytes + 4 * 2**20)))

    grid_spec = pltpu.PrefetchScalarGridSpec(
        num_scalar_prefetch=0,
        grid=(bs // b_tile,),
        in_specs=[
            pl.BlockSpec((b_tile, n, f_in), lambda b: (b, 0, 0)),   # h
            # NOTE: the four parameter arrays below have constant index maps;
            # on v7x they could use pipeline_mode=pl.Buffered(1) to avoid
            # re-double-buffering (skipped here for portability).
            pl.BlockSpec((f_in, F), lambda b: (0, 0)),              # w fused
            pl.BlockSpec((F, n_head), lambda b: (0, 0)),            # a_src packed
            pl.BlockSpec((n_head, F), lambda b: (0, 0)),            # a_dst packed
            pl.BlockSpec((1, F), lambda b: (0, 0)),                 # bias row
        ],
        out_specs=out_specs,
    )

    results = pl.pallas_call(
        kernel,
        out_shape=out_shapes,
        grid_spec=grid_spec,
        compiler_params=pltpu.CompilerParams(
            dimension_semantics=("parallel",),
            vmem_limit_bytes=vmem_limit),
    )(h_in, w_fused, asrc_pack, adst_pack, bias_row)

    # Layout plumbing back to the PyTorch output shapes.
    out = results[0].reshape(bs, n, n_head, f_out).transpose(0, 2, 1, 3)
    if not return_attn:
        return out
    attn = results[1].reshape(bs, n, n_head, n).transpose(0, 2, 1, 3)
    return out, attn


def _reference(h, w, a_src, a_dst, bias):
    # plain-JAX reference matching the PyTorch forward (eval-mode dropout)
    h_prime = jnp.einsum("bnf,hfo->bhno", h, w)                # (bs,nh,n,f_out)
    attn_src = jnp.einsum("bhno,hoi->bhni", h_prime, a_src)    # (bs,nh,n,1)
    attn_dst = jnp.einsum("bhno,hoi->bhni", h_prime, a_dst)    # (bs,nh,n,1)
    attn = attn_src + jnp.swapaxes(attn_dst, -1, -2)           # (bs,nh,n,n)
    attn = jnp.where(attn > 0, attn, 0.2 * attn)
    attn = jax.nn.softmax(attn, axis=-1)
    out = jnp.einsum("bhnm,bhmo->bhno", attn, h_prime) + bias
    return out, attn


def _xavier_uniform(key, shape, gain):
    # torch xavier_uniform_ on a 3-D tensor (n_head, f_in, f_out):
    # fan_in = f_in * f_out, fan_out = n_head * f_out
    fan_in = shape[1] * math.prod(shape[2:])
    fan_out = shape[0] * math.prod(shape[2:])
    bound = gain * math.sqrt(6.0 / (fan_in + fan_out))
    return jax.random.uniform(key, shape, jnp.float32, -bound, bound)


if __name__ == "__main__":
    bs, n, f_in, f_out, n_head = 2, 16, 8, 32, 4   # n_head*f_out = 128 lanes

    key = jax.random.PRNGKey(0)
    k_h, k_w, k_as, k_ad = jax.random.split(key, 4)

    h = jax.random.normal(k_h, (bs, n, f_in), jnp.float32)
    w = _xavier_uniform(k_w, (n_head, f_in, f_out), 1.414)
    a_src = _xavier_uniform(k_as, (n_head, f_out, 1), 1.414)
    a_dst = _xavier_uniform(k_ad, (n_head, f_out, 1), 1.414)
    bias = jnp.zeros((f_out,), jnp.float32)  # nn.init.constant_(bias, 0)

    ref_out, ref_attn = _reference(h, w, a_src, a_dst, bias)

    # 1) default: (out, attn), exact softmax normalization, auto b_tile (grid=2)
    out, attn = batch_multi_head_graph_attention(h, w, a_src, a_dst, bias)
    jax.block_until_ready((out, attn))
    assert out.shape == (bs, n_head, n, f_out) and attn.shape == (bs, n_head, n, n)
    assert jnp.allclose(out, ref_out, atol=2e-3, rtol=2e-3)
    assert jnp.allclose(attn, ref_attn, atol=1e-3, rtol=1e-3)

    # 2) out-only fast path: attn never computed/stored, EUP approx reciprocal
    out_only = batch_multi_head_graph_attention(h, w, a_src, a_dst, bias,
                                                return_attn=False)
    jax.block_until_ready(out_only)
    assert jnp.allclose(out_only, ref_out, atol=2e-3, rtol=2e-3)

    # 3) explicit batch tiling (b_tile=2 -> M = 32 in a single grid step)
    out2, attn2 = batch_multi_head_graph_attention(h, w, a_src, a_dst, bias,
                                                   b_tile=2)
    jax.block_until_ready((out2, attn2))
    assert jnp.allclose(out2, ref_out, atol=2e-3, rtol=2e-3)
    assert jnp.allclose(attn2, ref_attn, atol=1e-3, rtol=1e-3)

    # 4) bf16 MXU operands + bf16 attn writeback (bandwidth / VMEM saver)
    out3, attn3 = batch_multi_head_graph_attention(
        h, w, a_src, a_dst, bias, use_bf16_matmul=True, attn_dtype=jnp.bfloat16)
    jax.block_until_ready((out3, attn3))
    assert jnp.allclose(out3, ref_out, atol=5e-2, rtol=5e-2)
    assert jnp.allclose(attn3.astype(jnp.float32), ref_attn, atol=5e-2, rtol=5e-2)

    print("KERNEL_OK")
</pallas_src>

<mosaic_0001>
module attributes {stable_mosaic.version = 11 : i64} {
  func.func @_gat_kernel(%arg0: i32, %arg1: memref<1x16x8xf32, #tpu.memory_space<vmem>>, %arg2: memref<8x128xf32, #tpu.memory_space<vmem>>, %arg3: memref<128x4xf32, #tpu.memory_space<vmem>>, %arg4: memref<4x128xf32, #tpu.memory_space<vmem>>, %arg5: memref<1x128xf32, #tpu.memory_space<vmem>>, %arg6: memref<1x16x128xf32, #tpu.memory_space<vmem>>, %arg7: memref<1x16x64xf32, #tpu.memory_space<vmem>>) attributes {dimension_semantics = [#tpu.dimension_semantics<parallel>], iteration_bounds = array<i64: 2>, scalar_prefetch = 0 : i64, scratch_operands = 0 : i64, tpu.core_type = #tpu.core_type<tc>, window_params = [{transform_indices = @transform_0, window_bounds = array<i64: 1, 16, 8>}, {pipeline_mode = #tpu.pipeline_mode<synchronous>, transform_indices = @transform_1, window_bounds = array<i64: 8, 128>}, {pipeline_mode = #tpu.pipeline_mode<synchronous>, transform_indices = @transform_2, window_bounds = array<i64: 128, 4>}, {pipeline_mode = #tpu.pipeline_mode<synchronous>, transform_indices = @transform_3, window_bounds = array<i64: 4, 128>}, {pipeline_mode = #tpu.pipeline_mode<synchronous>, transform_indices = @transform_4, window_bounds = array<i64: 1, 128>}, {transform_indices = @transform_5, window_bounds = array<i64: 1, 16, 128>}, {transform_indices = @transform_6, window_bounds = array<i64: 1, 16, 64>}]} {
    %c0 = arith.constant 0 : index
    %c0_0 = arith.constant 0 : index
    %c0_1 = arith.constant 0 : index
    %0 = vector.load %arg1[%c0, %c0_0, %c0_1] : memref<1x16x8xf32, #tpu.memory_space<vmem>>, vector<1x16x8xf32>
    %1 = vector.shape_cast %0 : vector<1x16x8xf32> to vector<16x8xf32>
    %c0_2 = arith.constant 0 : index
    %c0_3 = arith.constant 0 : index
    %2 = vector.load %arg2[%c0_2, %c0_3] : memref<8x128xf32, #tpu.memory_space<vmem>>, vector<8x128xf32>
    %cst = arith.constant dense<0.000000e+00> : vector<16x128xf32>
    %3 = tpu.matmul %1, %2, %cst {dimension_numbers = #tpu.dot_dimension_numbers<[1], [0], [0], [1], [0, 0, 1, 1], [], []>} : vector<16x8xf32>, vector<8x128xf32>, vector<16x128xf32> -> vector<16x128xf32>
    %c0_4 = arith.constant 0 : index
    %c0_5 = arith.constant 0 : index
    %4 = vector.load %arg3[%c0_4, %c0_5] : memref<128x4xf32, #tpu.memory_space<vmem>>, vector<128x4xf32>
    %cst_6 = arith.constant dense<0.000000e+00> : vector<16x4xf32>
    %5 = tpu.matmul %3, %4, %cst_6 {dimension_numbers = #tpu.dot_dimension_numbers<[1], [0], [0], [1], [0, 0, 1, 1], [], []>} : vector<16x128xf32>, vector<128x4xf32>, vector<16x4xf32> -> vector<16x4xf32>
    %6 = vector.shape_cast %3 : vector<16x128xf32> to vector<1x16x128xf32>
    %7 = vector.shape_cast %5 : vector<16x4xf32> to vector<1x16x4xf32>
    %c0_7 = arith.constant 0 : index
    %c0_8 = arith.constant 0 : index
    %8 = vector.load %arg4[%c0_7, %c0_8] : memref<4x128xf32, #tpu.memory_space<vmem>>, vector<4x128xf32>
    %c0_9 = arith.constant 0 : index
    %c0_10 = arith.constant 0 : index
    %9 = vector.load %arg5[%c0_9, %c0_10] : memref<1x128xf32, #tpu.memory_space<vmem>>, vector<1x128xf32>
    %10 = vector.shape_cast %6 : vector<1x16x128xf32> to vector<16x128xf32>
    %11 = vector.shape_cast %7 : vector<1x16x4xf32> to vector<16x4xf32>
    %cst_11 = arith.constant dense<0.000000e+00> : vector<4x16xf32>
    %12 = tpu.matmul %8, %10, %cst_11 {dimension_numbers = #tpu.dot_dimension_numbers<[1], [1], [0], [0], [0, 0, 1, 0], [], []>} : vector<4x128xf32>, vector<16x128xf32>, vector<4x16xf32> -> vector<4x16xf32>
    %13 = vector.shape_cast %11 : vector<16x4xf32> to vector<16x4x1xf32>
    %14 = vector.shape_cast %12 : vector<4x16xf32> to vector<1x4x16xf32>
    %15 = vector.broadcast %13 : vector<16x4x1xf32> to vector<16x4x16xf32>
    %16 = vector.broadcast %14 : vector<1x4x16xf32> to vector<16x4x16xf32>
    %17 = arith.addf %15, %16 : vector<16x4x16xf32>
    %cst_12 = arith.constant 0.000000e+00 : f32
    %18 = vector.broadcast %cst_12 : f32 to vector<16x4x16xf32>
    %19 = arith.cmpf ogt, %17, %18 : vector<16x4x16xf32>
    %cst_13 = arith.constant 2.000000e-01 : f32
    %20 = vector.broadcast %cst_13 : f32 to vector<16x4x16xf32>
    %21 = arith.mulf %20, %17 : vector<16x4x16xf32>
    %22 = arith.select %19, %17, %21 : vector<16x4x16xi1>, vector<16x4x16xf32>
    %cst_14 = arith.constant dense<0xFF800000> : vector<16x4xf32>
    %23 = vector.multi_reduction <maximumf>, %22, %cst_14 [2] : vector<16x4x16xf32> to vector<16x4xf32>
    %24 = vector.shape_cast %23 : vector<16x4xf32> to vector<16x4x1xf32>
    %25 = vector.broadcast %24 : vector<16x4x1xf32> to vector<16x4x16xf32>
    %26 = arith.subf %22, %25 : vector<16x4x16xf32>
    %27 = math.exp %26 : vector<16x4x16xf32>
    %cst_15 = arith.constant dense<0.000000e+00> : vector<16x4xf32>
    %28 = vector.multi_reduction <add>, %27, %cst_15 [2] : vector<16x4x16xf32> to vector<16x4xf32>
    %29 = vector.shape_cast %28 : vector<16x4xf32> to vector<16x4x1xf32>
    %30 = tpu.reciprocal %29 : vector<16x4x1xf32> -> vector<16x4x1xf32>
    %31 = vector.broadcast %30 : vector<16x4x1xf32> to vector<16x4x16xf32>
    %32 = arith.mulf %27, %31 : vector<16x4x16xf32>
    %33 = vector.extract_strided_slice %32 {offsets = [0, 0, 0], sizes = [16, 1, 16], strides = [1, 1, 1]} : vector<16x4x16xf32> to vector<16x1x16xf32>
    %34 = vector.shape_cast %33 : vector<16x1x16xf32> to vector<16x16xf32>
    %35 = vector.extract_strided_slice %10 {offsets = [0, 0], sizes = [16, 32], strides = [1, 1]} : vector<16x128xf32> to vector<16x32xf32>
    %cst_16 = arith.constant dense<0.000000e+00> : vector<16x32xf32>
    %36 = tpu.matmul %34, %35, %cst_16 {dimension_numbers = #tpu.dot_dimension_numbers<[1], [0], [0], [1], [0, 0, 1, 1], [], []>} : vector<16x16xf32>, vector<16x32xf32>, vector<16x32xf32> -> vector<16x32xf32>
    %37 = vector.extract_strided_slice %32 {offsets = [0, 1, 0], sizes = [16, 1, 16], strides = [1, 1, 1]} : vector<16x4x16xf32> to vector<16x1x16xf32>
    %38 = vector.shape_cast %37 : vector<16x1x16xf32> to vector<16x16xf32>
    %39 = vector.extract_strided_slice %10 {offsets = [0, 32], sizes = [16, 32], strides = [1, 1]} : vector<16x128xf32> to vector<16x32xf32>
    %cst_17 = arith.constant dense<0.000000e+00> : vector<16x32xf32>
    %40 = tpu.matmul %38, %39, %cst_17 {dimension_numbers = #tpu.dot_dimension_numbers<[1], [0], [0], [1], [0, 0, 1, 1], [], []>} : vector<16x16xf32>, vector<16x32xf32>, vector<16x32xf32> -> vector<16x32xf32>
    %41 = vector.extract_strided_slice %32 {offsets = [0, 2, 0], sizes = [16, 1, 16], strides = [1, 1, 1]} : vector<16x4x16xf32> to vector<16x1x16xf32>
    %42 = vector.shape_cast %41 : vector<16x1x16xf32> to vector<16x16xf32>
    %43 = vector.extract_strided_slice %10 {offsets = [0, 64], sizes = [16, 32], strides = [1, 1]} : vector<16x128xf32> to vector<16x32xf32>
    %cst_18 = arith.constant dense<0.000000e+00> : vector<16x32xf32>
    %44 = tpu.matmul %42, %43, %cst_18 {dimension_numbers = #tpu.dot_dimension_numbers<[1], [0], [0], [1], [0, 0, 1, 1], [], []>} : vector<16x16xf32>, vector<16x32xf32>, vector<16x32xf32> -> vector<16x32xf32>
    %45 = vector.extract_strided_slice %32 {offsets = [0, 3, 0], sizes = [16, 1, 16], strides = [1, 1, 1]} : vector<16x4x16xf32> to vector<16x1x16xf32>
    %46 = vector.shape_cast %45 : vector<16x1x16xf32> to vector<16x16xf32>
    %47 = vector.extract_strided_slice %10 {offsets = [0, 96], sizes = [16, 32], strides = [1, 1]} : vector<16x128xf32> to vector<16x32xf32>
    %cst_19 = arith.constant dense<0.000000e+00> : vector<16x32xf32>
    %48 = tpu.matmul %46, %47, %cst_19 {dimension_numbers = #tpu.dot_dimension_numbers<[1], [0], [0], [1], [0, 0, 1, 1], [], []>} : vector<16x16xf32>, vector<16x32xf32>, vector<16x32xf32> -> vector<16x32xf32>
    %49 = tpu.concatenate %34, %38, %42, %46 in 1 : vector<16x16xf32>, vector<16x16xf32>, vector<16x16xf32>, vector<16x16xf32> -> vector<16x64xf32>
    %c0_20 = arith.constant 0 : index
    %c0_21 = arith.constant 0 : index
    %c0_22 = arith.constant 0 : index
    %50 = vector.load %arg7[%c0_20, %c0_21, %c0_22] : memref<1x16x64xf32, #tpu.memory_space<vmem>>, vector<1x16x64xf32>
    %51 = vector.shape_cast %50 : vector<1x16x64xf32> to vector<16x64xf32>
    %52 = vector.shape_cast %49 : vector<16x64xf32> to vector<1x16x64xf32>
    tpu.vector_store %arg7[%c0_20, %c0_21, %c0_22], %52 {strides = array<i32>} : memref<1x16x64xf32, #tpu.memory_space<vmem>>, vector<1x16x64xf32>,
    %53 = tpu.concatenate %36, %40, %44, %48 in 1 : vector<16x32xf32>, vector<16x32xf32>, vector<16x32xf32>, vector<16x32xf32> -> vector<16x128xf32>
    %54 = vector.broadcast %9 : vector<1x128xf32> to vector<16x128xf32>
    %55 = arith.addf %53, %54 : vector<16x128xf32>
    %c0_23 = arith.constant 0 : index
    %c0_24 = arith.constant 0 : index
    %c0_25 = arith.constant 0 : index
    %56 = vector.load %arg6[%c0_23, %c0_24, %c0_25] : memref<1x16x128xf32, #tpu.memory_space<vmem>>, vector<1x16x128xf32>
    %57 = vector.shape_cast %56 : vector<1x16x128xf32> to vector<16x128xf32>
    %58 = vector.shape_cast %55 : vector<16x128xf32> to vector<1x16x128xf32>
    tpu.vector_store %arg6[%c0_23, %c0_24, %c0_25], %58 {strides = array<i32>} : memref<1x16x128xf32, #tpu.memory_space<vmem>>, vector<1x16x128xf32>,
    return
  }
  func.func @transform_0(%arg0: i32) -> (i32, i32, i32) {
    %c0_i32 = arith.constant 0 : i32
    %c0_i32_0 = arith.constant 0 : i32
    %c0_i32_1 = arith.constant 0 : i32
    return %arg0, %c0_i32, %c0_i32_0 : i32, i32, i32
  }
  func.func @transform_1(%arg0: i32) -> (i32, i32) {
    %c0_i32 = arith.constant 0 : i32
    %c0_i32_0 = arith.constant 0 : i32
    %c0_i32_1 = arith.constant 0 : i32
    return %c0_i32, %c0_i32_0 : i32, i32
  }
  func.func @transform_2(%arg0: i32) -> (i32, i32) {
    %c0_i32 = arith.constant 0 : i32
    %c0_i32_0 = arith.constant 0 : i32
    %c0_i32_1 = arith.constant 0 : i32
    return %c0_i32, %c0_i32_0 : i32, i32
  }
  func.func @transform_3(%arg0: i32) -> (i32, i32) {
    %c0_i32 = arith.constant 0 : i32
    %c0_i32_0 = arith.constant 0 : i32
    %c0_i32_1 = arith.constant 0 : i32
    return %c0_i32, %c0_i32_0 : i32, i32
  }
  func.func @transform_4(%arg0: i32) -> (i32, i32) {
    %c0_i32 = arith.constant 0 : i32
    %c0_i32_0 = arith.constant 0 : i32
    %c0_i32_1 = arith.constant 0 : i32
    return %c0_i32, %c0_i32_0 : i32, i32
  }
  func.func @transform_5(%arg0: i32) -> (i32, i32, i32) {
    %c0_i32 = arith.constant 0 : i32
    %c0_i32_0 = arith.constant 0 : i32
    %c0_i32_1 = arith.constant 0 : i32
    return %arg0, %c0_i32, %c0_i32_0 : i32, i32, i32
  }
  func.func @transform_6(%arg0: i32) -> (i32, i32, i32) {
    %c0_i32 = arith.constant 0 : i32
    %c0_i32_0 = arith.constant 0 : i32
    %c0_i32_1 = arith.constant 0 : i32
    return %arg0, %c0_i32, %c0_i32_0 : i32, i32, i32
  }
}

</mosaic_0001>

<llo_original>
// kernel: tpu_custom_call.1
$region0: #{tpu_custom_call.1}
  #allocation0 [shape = 'u32[]', space=smem, size = 0x4, offset = 0x4, fixed_abs, tag = 'smem constant byte address 0x4 - core index']
  #allocation1 [shape = 'u32[144,128]{1,0:T(1,128)}', space=vmem, size = 0x12000, scoped, tag = 'internal scratch']
  %s0 = inlined_call_operand.vmem [shape: f32[2,16,8], index: 0, kind: input, shape index: {}]
  %s1 = inlined_call_operand.vmem [shape: f32[8,128], index: 1, kind: input, shape index: {}]
  %s2 = inlined_call_operand.vmem [shape: f32[128,4], index: 2, kind: input, shape index: {}]
  %s3 = inlined_call_operand.vmem [shape: f32[4,128], index: 3, kind: input, shape index: {}]
  %s4 = inlined_call_operand.vmem [shape: f32[1,128], index: 4, kind: input, shape index: {}]
  %s5 = inlined_call_operand.hbm [shape: f32[2,16,128], index: 5, kind: output, shape index: {0}]
  %s6 = inlined_call_operand.hbm [shape: f32[2,16,64], index: 6, kind: output, shape index: {1}]
  %7 = xla_tuple %s5, %s6
  %s8 = sld [smem:[#allocation0]]
  $region61: #{tpu_custom_call.1} parent=0
    _
  %s10 = ssub.s32 1, %s8
  %s11 = scalar_select 0, %s10, %s8
  $region1: #{tpu_custom_call.1} parent=0
    #allocation2 [shape = 'u8[16384]{0}', space=vmem, size = 0x4000, scoped, tag = 'output window, operand 0']
    #allocation3 [shape = 's32[2]{0}', space=sflag, size = 0x8, scoped, tag = 'scoped memory for tpu_custom_call.1']
    #allocation4 [shape = 'u8[16384]{0}', space=vmem, size = 0x4000, scoped, tag = 'output window, operand 1']
    #allocation5 [shape = 's32[2]{0}', space=sflag, size = 0x8, scoped, tag = 'scoped memory for tpu_custom_call.1']
    %12 = vsyncpa [#allocation3], 0
    %s13 = scalar_lea.sflag [#allocation3], 1
    %14 = vsyncpa %s13, 0
    %15 = vsyncpa [#allocation5], 0
    %s16 = scalar_lea.sflag [#allocation5], 1
    %17 = vsyncpa %s16, 0
    loop: start=0, step=1, limit=4
    $region2: #{tpu_custom_call.1} parent=1 // loop_pre_header
      _
    $region3: #{tpu_custom_call.1} parent=1 // loop_header
      %s19 = sphi 0, %s23
      %p20 = scmp.ge.s32.totalorder %s19, 4
      %s29 = sphi 0, %s31
      %s32 = sphi 0, %s29
      %s33 = sphi 0, %s32
      %s49 = sphi 0, %s33
      %s53 = sphi 0, %s53
      %s55 = sphi 0, %s53
      %s56 = sphi 0, %s55
      %s70 = sphi 0, %s56
      %s74 = sphi 0, %s74
      %s76 = sphi 0, %s74
      %s77 = sphi 0, %s76
      %s91 = sphi 0, %s77
      %s95 = sphi 0, %s95
      %s97 = sphi 0, %s95
      %s98 = sphi 0, %s97
      %s112 = sphi 0, %s98
      %s116 = sphi 0, %s116
      %s118 = sphi 0, %s116
      %s119 = sphi 0, %s118
      %s133 = sphi 0, %s119
      %s139 = sphi 0, %s141
      %s142 = sphi 0, %s139
      %s143 = sphi 0, %s142
      %s159 = sphi 0, %s143
      %s165 = sphi 0, %s167
      %s168 = sphi 0, %s165
      %s169 = sphi 0, %s168
      %s185 = sphi 0, %s169
    $region4: #{tpu_custom_call.1} parent=1 // loop_header_branch
      %22 = sbr.rel (%p20) target = $region8
    $region5: #{tpu_custom_call.1} parent=1 // loop_body
      %s24 = ssub.s32 %s19, 1
      %s25 = ssub.s32 %s19, 2
      %s26 = sadd.s32 %s19, 1
      %s27 = ssub.s32 %s19, %s26
      %p28 = scmp.eq.s32.totalorder %s27, 0
      %s30 = sadd.s32 %s29, 1
      %s31 = scalar_select %p28, %s29, %s30
      %p34 = pneg %p28
      %p35 = scmp.eq.s32.totalorder %s19, 1
      %p36 = por %p34, %p35
      %p37 = scmp.ne.s32.totalorder %s29, %s32
      %p38 = scmp.eq.s32.totalorder %s19, 0
      %p39 = por %p37, %p38
      %p40 = scmp.ne.s32.totalorder %s29, %s32
      %p41 = scmp.eq.s32.totalorder %s24, 1
      %p42 = por %p40, %p41
      %p43 = scmp.ne.s32.totalorder %s32, %s33
      %p44 = scmp.eq.s32.totalorder %s24, 0
      %p45 = por %p43, %p44
      %p46 = scmp.ne.s32.totalorder %s32, %s33
      %p47 = scmp.eq.s32.totalorder %s25, 1
      %p48 = por %p46, %p47
      %p50 = scmp.ne.s32.totalorder %s33, %s49
      %p51 = scmp.eq.s32.totalorder %s25, 0
      %p52 = por %p50, %p51
      %s54 = sadd.s32 %s53, 1
      %p57 = scmp.eq.s32.totalorder %s19, 1
      %p58 = scmp.ne.s32.totalorder %s53, %s55
      %p59 = scmp.eq.s32.totalorder %s19, 0
      %p60 = por %p58, %p59
      %p61 = scmp.ne.s32.totalorder %s53, %s55
      %p62 = scmp.eq.s32.totalorder %s24, 1
      %p63 = por %p61, %p62
      %p64 = scmp.ne.s32.totalorder %s55, %s56
      %p65 = scmp.eq.s32.totalorder %s24, 0
      %p66 = por %p64, %p65
      %p67 = scmp.ne.s32.totalorder %s55, %s56
      %p68 = scmp.eq.s32.totalorder %s25, 1
      %p69 = por %p67, %p68
      %p71 = scmp.ne.s32.totalorder %s56, %s70
      %p72 = scmp.eq.s32.totalorder %s25, 0
      %p73 = por %p71, %p72
      %s75 = sadd.s32 %s74, 1
      %p78 = scmp.eq.s32.totalorder %s19, 1
      %p79 = scmp.ne.s32.totalorder %s74, %s76
      %p80 = scmp.eq.s32.totalorder %s19, 0
      %p81 = por %p79, %p80
      %p82 = scmp.ne.s32.totalorder %s74, %s76
      %p83 = scmp.eq.s32.totalorder %s24, 1
      %p84 = por %p82, %p83
      %p85 = scmp.ne.s32.totalorder %s76, %s77
      %p86 = scmp.eq.s32.totalorder %s24, 0
      %p87 = por %p85, %p86
      %p88 = scmp.ne.s32.totalorder %s76, %s77
      %p89 = scmp.eq.s32.totalorder %s25, 1
      %p90 = por %p88, %p89
      %p92 = scmp.ne.s32.totalorder %s77, %s91
      %p93 = scmp.eq.s32.totalorder %s25, 0
      %p94 = por %p92, %p93
      %s96 = sadd.s32 %s95, 1
      %p99 = scmp.eq.s32.totalorder %s19, 1
      %p100 = scmp.ne.s32.totalorder %s95, %s97
      %p101 = scmp.eq.s32.totalorder %s19, 0
      %p102 = por %p100, %p101
      %p103 = scmp.ne.s32.totalorder %s95, %s97
      %p104 = scmp.eq.s32.totalorder %s24, 1
      %p105 = por %p103, %p104
      %p106 = scmp.ne.s32.totalorder %s97, %s98
      %p107 = scmp.eq.s32.totalorder %s24, 0
      %p108 = por %p106, %p107
      %p109 = scmp.ne.s32.totalorder %s97, %s98
      %p110 = scmp.eq.s32.totalorder %s25, 1
      %p111 = por %p109, %p110
      %p113 = scmp.ne.s32.totalorder %s98, %s112
      %p114 = scmp.eq.s32.totalorder %s25, 0
      %p115 = por %p113, %p114
      %s117 = sadd.s32 %s116, 1
      %p120 = scmp.eq.s32.totalorder %s19, 1
      %p121 = scmp.ne.s32.totalorder %s116, %s118
      %p122 = scmp.eq.s32.totalorder %s19, 0
      %p123 = por %p121, %p122
      %p124 = scmp.ne.s32.totalorder %s116, %s118
      %p125 = scmp.eq.s32.totalorder %s24, 1
      %p126 = por %p124, %p125
      %p127 = scmp.ne.s32.totalorder %s118, %s119
      %p128 = scmp.eq.s32.totalorder %s24, 0
      %p129 = por %p127, %p128
      %p130 = scmp.ne.s32.totalorder %s118, %s119
      %p131 = scmp.eq.s32.totalorder %s25, 1
      %p132 = por %p130, %p131
      %p134 = scmp.ne.s32.totalorder %s119, %s133
      %p135 = scmp.eq.s32.totalorder %s25, 0
      %p136 = por %p134, %p135
      %s137 = ssub.s32 %s19, %s26
      %p138 = scmp.eq.s32.totalorder %s137, 0
      %s140 = sadd.s32 %s139, 1
      %s141 = scalar_select %p138, %s139, %s140
      %p144 = pneg %p138
      %p145 = scmp.eq.s32.totalorder %s19, 1
      %p146 = por %p144, %p145
      %p147 = scmp.ne.s32.totalorder %s139, %s142
      %p148 = scmp.eq.s32.totalorder %s19, 0
      %p149 = por %p147, %p148
      %p150 = scmp.ne.s32.totalorder %s139, %s142
      %p151 = scmp.eq.s32.totalorder %s24, 1
      %p152 = por %p150, %p151
      %p153 = scmp.ne.s32.totalorder %s142, %s143
      %p154 = scmp.eq.s32.totalorder %s24, 0
      %p155 = por %p153, %p154
      %p156 = scmp.ne.s32.totalorder %s142, %s143
      %p157 = scmp.eq.s32.totalorder %s25, 1
      %p158 = por %p156, %p157
      %p160 = scmp.ne.s32.totalorder %s143, %s159
      %p161 = scmp.eq.s32.totalorder %s25, 0
      %p162 = por %p160, %p161
      %s163 = ssub.s32 %s19, %s26
      %p164 = scmp.eq.s32.totalorder %s163, 0
      %s166 = sadd.s32 %s165, 1
      %s167 = scalar_select %p164, %s165, %s166
      %p170 = pneg %p164
      %p171 = scmp.eq.s32.totalorder %s19, 1
      %p172 = por %p170, %p171
      %p173 = scmp.ne.s32.totalorder %s165, %s168
      %p174 = scmp.eq.s32.totalorder %s19, 0
      %p175 = por %p173, %p174
      %p176 = scmp.ne.s32.totalorder %s165, %s168
      %p177 = scmp.eq.s32.totalorder %s24, 1
      %p178 = por %p176, %p177
      %p179 = scmp.ne.s32.totalorder %s168, %s169
      %p180 = scmp.eq.s32.totalorder %s24, 0
      %p181 = por %p179, %p180
      %p182 = scmp.ne.s32.totalorder %s168, %s169
      %p183 = scmp.eq.s32.totalorder %s25, 1
      %p184 = por %p182, %p183
      %p186 = scmp.ne.s32.totalorder %s169, %s185
      %p187 = scmp.eq.s32.totalorder %s25, 0
      %p188 = por %p186, %p187
      %p189 = scmp.le.s32.totalorder 1, %s19
      %p190 = scmp.lt.s32.totalorder %s19, 3
      %p191 = pnand %p189, %p190
      %p192 = pneg %p191
      // Predicated region
      $region9: #{tpu_custom_call.1} parent=5 // pred_check
        _
      $region10: #{tpu_custom_call.1} parent=5 // pred_check_branch
        %194 = sbr.rel (%p191) target = $region12
      $region11: #{tpu_custom_call.1} parent=5 // pred_region
        %s195 = ssub.s32 %s19, 1
        // Predicated region
        $region13: #{tpu_custom_call.1} parent=11 // pred_check
          %p196 = pneg %p66
        $region14: #{tpu_custom_call.1} parent=11 // pred_check_branch
          %198 = sbr.rel (%p196) target = $region16
        $region15: #{tpu_custom_call.1} parent=11 // pred_region
          _
        $region16: #{tpu_custom_call.1} parent=11 // pred_fallthru
          _
        // Predicated region
        $region17: #{tpu_custom_call.1} parent=11 // pred_check
          %p199 = pneg %p87
        $region18: #{tpu_custom_call.1} parent=11 // pred_check_branch
          %201 = sbr.rel (%p199) target = $region20
        $region19: #{tpu_custom_call.1} parent=11 // pred_region
          _
        $region20: #{tpu_custom_call.1} parent=11 // pred_fallthru
          _
        // Predicated region
        $region21: #{tpu_custom_call.1} parent=11 // pred_check
          %p202 = pneg %p108
        $region22: #{tpu_custom_call.1} parent=11 // pred_check_branch
          %204 = sbr.rel (%p202) target = $region24
        $region23: #{tpu_custom_call.1} parent=11 // pred_region
          _
        $region24: #{tpu_custom_call.1} parent=11 // pred_fallthru
          _
        // Predicated region
        $region25: #{tpu_custom_call.1} parent=11 // pred_check
          %p205 = pneg %p129
        $region26: #{tpu_custom_call.1} parent=11 // pred_check_branch
          %207 = sbr.rel (%p205) target = $region28
        $region27: #{tpu_custom_call.1} parent=11 // pred_region
          _
        $region28: #{tpu_custom_call.1} parent=11 // pred_fallthru
          _
      $region12: #{tpu_custom_call.1} parent=5 // pred_fallthru
        _
      %p208 = scmp.lt.s32.totalorder %s19, 2
      // Predicated region
      $region29: #{tpu_custom_call.1} parent=5 // pred_check
        %p209 = pneg %p208
      $region30: #{tpu_custom_call.1} parent=5 // pred_check_branch
        %211 = sbr.rel (%p209) target = $region32
      $region31: #{tpu_custom_call.1} parent=5 // pred_region
        // Predicated region
        $region33: #{tpu_custom_call.1} parent=31 // pred_check
          %p212 = pneg %p39
        $region34: #{tpu_custom_call.1} parent=31 // pred_check_branch
          %214 = sbr.rel (%p212) target = $region36
        $region35: #{tpu_custom_call.1} parent=31 // pred_region
          %p215 = scmp.lt.s32.totalorder %s19, 1
          %s216 = scalar_select %p215, %s19, 1
          %s217 = smul.addr %s216, 2
          %s218 = smul.addr %s217, 8
          %s219 = scalar_lea.vmem %s0, %s218
        $region36: #{tpu_custom_call.1} parent=31 // pred_fallthru
          _
      $region32: #{tpu_custom_call.1} parent=5 // pred_fallthru
        _
      %p220 = scmp.le.s32.totalorder 1, %s19
      %p221 = scmp.lt.s32.totalorder %s19, 3
      %p222 = pnand %p220, %p221
      %p223 = pneg %p222
      // Predicated region
      $region37: #{tpu_custom_call.1} parent=5 // pred_check
        _
      $region38: #{tpu_custom_call.1} parent=5 // pred_check_branch
        %225 = sbr.rel (%p222) target = $region40
      $region39: #{tpu_custom_call.1} parent=5 // pred_region
        %s226 = ssub.s32 %s19, 1
        %p227 = scmp.lt.s32.totalorder %s24, 1
        %s228 = scalar_select %p227, %s24, 1
        %s229 = smul.addr %s228, 2
        %s230 = smul.addr %s229, 8
        %s231 = scalar_lea.vmem %s0, %s230
        %p232 = pneg %p45
        %p233 = pneg %p42
        %p234 = pneg %p66
        %p235 = pneg %p63
        %p236 = pneg %p87
        %p237 = pneg %p84
        %p238 = pneg %p108
        %p239 = pneg %p105
        %p240 = pneg %p129
        %p241 = pneg %p126
        %p242 = pneg %p155
        %p243 = pneg %p152
        %s244 = sand.u32 %s142, 1
        %s245 = scalar_lea.sflag [#allocation3], %s244
        %s246 = sand.u32 %s142, 1
        %s247 = smul.addr %s246, 16
        %s248 = scalar_lea.vmem [#allocation2], %s247
        %p249 = pneg %p181
        %p250 = pneg %p178
        %s251 = sand.u32 %s168, 1
        %s252 = scalar_lea.sflag [#allocation5], %s251
        %s253 = sand.u32 %s168, 1
        %s254 = smul.addr %s253, 16
        %s255 = scalar_lea.vmem [#allocation4], %s254
        %p256 = scmp.lt.s32.totalorder %s24, 1
        %s257 = scalar_select %p256, %s24, 1
        %s258 = smul.addr %s257, 2
        %s259 = smul.addr %s258, 8
        %s260 = scalar_lea.vmem %s0, %s259
        %v261 = vld [vmem:[%s260] sm:$0xff]
        %v262 = vld [vmem:[%s260 + $0x8] sm:$0xff]
        %v263 = vld [vmem:[%s1] sm:$0xff]
        %vm264 = vcmask 64512
        %v266 = vsel %vm264, %v261, 0
        %v269 = vsel %vm264, %v262, 0
        %271 = vmatprep.subr.mxu0 0.0
        %272 = vmatpush1.msra.mxu0 %v263
        %273 = vmatprep.subr.mxu0 0.0
        %274 = vmatpush1.msra.mxu0 0.0
        %275 = vmatprep.subr.mxu0 0.0
        %276 = vmatpush1.msra.mxu0 0.0
        %277 = vmatprep.subr.mxu0 0.0
        %278 = vmatpush1.msra.mxu0 0.0
        %279 = vmatprep.subr.mxu0 0.0
        %280 = vmatpush1.msra.mxu0 0.0
        %281 = vmatprep.subr.mxu0 0.0
        %282 = vmatpush1.msra.mxu0 0.0
        %283 = vmatprep.subr.mxu0 0.0
        %284 = vmatpush1.msra.mxu0 0.0
        %285 = vmatprep.subr.mxu0 0.0
        %286 = vmatpush1.msra.mxu0 0.0
        %287 = vmatprep.subr.mxu0 0.0
        %288 = vmatpush1.msra.mxu0 0.0
        %289 = vmatprep.subr.mxu0 0.0
        %290 = vmatpush1.msra.mxu0 0.0
        %291 = vmatprep.subr.mxu0 0.0
        %292 = vmatpush1.msra.mxu0 0.0
        %293 = vmatprep.subr.mxu0 0.0
        %294 = vmatpush1.msra.mxu0 0.0
        %295 = vmatprep.subr.mxu0 0.0
        %296 = vmatpush1.msra.mxu0 0.0
        %297 = vmatprep.subr.mxu0 0.0
        %298 = vmatpush1.msra.mxu0 0.0
        %299 = vmatprep.subr.mxu0 0.0
        %300 = vmatpush1.msra.mxu0 0.0
        %301 = vmatprep.subr.mxu0 0.0
        %302 = vmatpush1.msra.mxu0 0.0
        %303 = vmatprep.subr.mxu0 0.0
        %304 = vmatpush1.msra.mxu0 0.0
        %305 = vmatprep.subr.mxu0 0.0
        %306 = vmatpush1.msra.mxu0 0.0
        %307 = vmatprep.subr.mxu0 0.0
        %308 = vmatpush1.msra.mxu0 0.0
        %309 = vmatprep.subr.mxu0 0.0
        %310 = vmatpush1.msra.mxu0 0.0
        %311 = vmatprep.subr.mxu0 0.0
        %312 = vmatpush1.msra.mxu0 0.0
        %313 = vmatprep.subr.mxu0 0.0
        %314 = vmatpush1.msra.mxu0 0.0
        %315 = vmatprep.subr.mxu0 0.0
        %316 = vmatpush1.msra.mxu0 0.0
        %317 = vmatprep.subr.mxu0 0.0
        %318 = vmatpush1.msra.mxu0 0.0
        %319 = vmatprep.subr.mxu0 0.0
        %320 = vmatpush1.msra.mxu0 0.0
        %321 = vmatprep.subr.mxu0 0.0
        %322 = vmatpush1.msra.mxu0 0.0
        %323 = vmatprep.subr.mxu0 0.0
        %324 = vmatpush1.msra.mxu0 0.0
        %325 = vmatprep.subr.mxu0 0.0
        %326 = vmatpush1.msra.mxu0 0.0
        %327 = vmatprep.subr.mxu0 0.0
        %328 = vmatpush1.msra.mxu0 0.0
        %329 = vmatprep.subr.mxu0 0.0
        %330 = vmatpush1.msra.mxu0 0.0
        %331 = vmatprep.subr.mxu0 0.0
        %332 = vmatpush1.msra.mxu0 0.0
        %333 = vmatprep.subr.mxu0 0.0
        %334 = vmatpush1.msra.mxu0 0.0
        %335 = vmatprep.mubr.f32.mxu0 0.0
        %336 = vmatmul.mubr.f32.gmra.mrb[0].mxu0 %v266
        %v337 = vpop.f32.mrb[0].mxu0
        %v338 = vadd.f32 0.0, %v337
        %v339 = vpop.f32.mrb[0].mxu0
        %340 = vmatprep.mubr.f32.mxu0 0.0
        %341 = vmatmul.mubr.f32.gmra.mrb[0].mxu0 %v269
        %v342 = vpop.f32.mrb[0].mxu0
        %v343 = vadd.f32 0.0, %v342
        %v344 = vpop.f32.mrb[0].mxu0
        %345 = vdwg.mxu0
        %v346 = vld [vmem:[%s2] sm:$0xff]
        %v347 = vld [vmem:[%s2 + $0x8] sm:$0xff]
        %v348 = vld [vmem:[%s2 + $0x10] sm:$0xff]
        %v349 = vld [vmem:[%s2 + $0x18] sm:$0xff]
        %v350 = vld [vmem:[%s2 + $0x20] sm:$0xff]
        %v351 = vld [vmem:[%s2 + $0x28] sm:$0xff]
        %v352 = vld [vmem:[%s2 + $0x30] sm:$0xff]
        %v353 = vld [vmem:[%s2 + $0x38] sm:$0xff]
        %v354 = vld [vmem:[%s2 + $0x40] sm:$0xff]
        %v355 = vld [vmem:[%s2 + $0x48] sm:$0xff]
        %v356 = vld [vmem:[%s2 + $0x50] sm:$0xff]
        %v357 = vld [vmem:[%s2 + $0x58] sm:$0xff]
        %v358 = vld [vmem:[%s2 + $0x60] sm:$0xff]
        %v359 = vld [vmem:[%s2 + $0x68] sm:$0xff]
        %v360 = vld [vmem:[%s2 + $0x70] sm:$0xff]
        %v361 = vld [vmem:[%s2 + $0x78] sm:$0xff]
        %362 = vmatprep.subr.mxu0 0.0
        %363 = vmatpush1.msra.mxu0 %v346
        %364 = vmatprep.subr.mxu0 0.0
        %365 = vmatpush1.msra.mxu0 %v347
        %366 = vmatprep.subr.mxu0 0.0
        %367 = vmatpush1.msra.mxu0 %v348
        %368 = vmatprep.subr.mxu0 0.0
        %369 = vmatpush1.msra.mxu0 %v349
        %370 = vmatprep.subr.mxu0 0.0
        %371 = vmatpush1.msra.mxu0 %v350
        %372 = vmatprep.subr.mxu0 0.0
        %373 = vmatpush1.msra.mxu0 %v351
        %374 = vmatprep.subr.mxu0 0.0
        %375 = vmatpush1.msra.mxu0 %v352
        %376 = vmatprep.subr.mxu0 0.0
        %377 = vmatpush1.msra.mxu0 %v353
        %378 = vmatprep.subr.mxu0 0.0
        %379 = vmatpush1.msra.mxu0 %v354
        %380 = vmatprep.subr.mxu0 0.0
        %381 = vmatpush1.msra.mxu0 %v355
        %382 = vmatprep.subr.mxu0 0.0
        %383 = vmatpush1.msra.mxu0 %v356
        %384 = vmatprep.subr.mxu0 0.0
        %385 = vmatpush1.msra.mxu0 %v357
        %386 = vmatprep.subr.mxu0 0.0
        %387 = vmatpush1.msra.mxu0 %v358
        %388 = vmatprep.subr.mxu0 0.0
        %389 = vmatpush1.msra.mxu0 %v359
        %390 = vmatprep.subr.mxu0 0.0
        %391 = vmatpush1.msra.mxu0 %v360
        %392 = vmatprep.subr.mxu0 0.0
        %393 = vmatpush1.msra.mxu0 %v361
        %394 = vmatprep.subr.mxu0 0.0
        %395 = vmatpush1.msra.mxu0 0.0
        %396 = vmatprep.subr.mxu0 0.0
        %397 = vmatpush1.msra.mxu0 0.0
        %398 = vmatprep.subr.mxu0 0.0
        %399 = vmatpush1.msra.mxu0 0.0
        %400 = vmatprep.subr.mxu0 0.0
        %401 = vmatpush1.msra.mxu0 0.0
        %402 = vmatprep.subr.mxu0 0.0
        %403 = vmatpush1.msra.mxu0 0.0
        %404 = vmatprep.subr.mxu0 0.0
        %405 = vmatpush1.msra.mxu0 0.0
        %406 = vmatprep.subr.mxu0 0.0
        %407 = vmatpush1.msra.mxu0 0.0
        %408 = vmatprep.subr.mxu0 0.0
        %409 = vmatpush1.msra.mxu0 0.0
        %410 = vmatprep.subr.mxu0 0.0
        %411 = vmatpush1.msra.mxu0 0.0
        %412 = vmatprep.subr.mxu0 0.0
        %413 = vmatpush1.msra.mxu0 0.0
        %414 = vmatprep.subr.mxu0 0.0
        %415 = vmatpush1.msra.mxu0 0.0
        %416 = vmatprep.subr.mxu0 0.0
        %417 = vmatpush1.msra.mxu0 0.0
        %418 = vmatprep.subr.mxu0 0.0
        %419 = vmatpush1.msra.mxu0 0.0
        %420 = vmatprep.subr.mxu0 0.0
        %421 = vmatpush1.msra.mxu0 0.0
        %422 = vmatprep.subr.mxu0 0.0
        %423 = vmatpush1.msra.mxu0 0.0
        %424 = vmatprep.subr.mxu0 0.0
        %425 = vmatpush1.msra.mxu0 0.0
        %426 = vmatprep.mubr.f32.mxu0 0.0
        %427 = vmatmul.mubr.f32.gmra.mrb[0].mxu0 %v338
        %v428 = vpop.f32.mrb[0].mxu0
        %v429 = vadd.f32 0.0, %v428
        %v430 = vpop.f32.mrb[0].mxu0
        %431 = vmatprep.mubr.f32.mxu0 0.0
        %432 = vmatmul.mubr.f32.gmra.mrb[0].mxu0 %v343
        %v433 = vpop.f32.mrb[0].mxu0
        %v434 = vadd.f32 0.0, %v433
        %v435 = vpop.f32.mrb[0].mxu0
        %436 = vdwg.mxu0
        %v437 = vld [vmem:[%s3] sm:$0xf]
        %v438 = vld [vmem:[%s4] sm:$0x1]
        %439 = vmatprep.subr.mxu0 0.0
        %440 = vmatpush1.xpose.msra.mxu0 %v338
        %441 = vmatprep.subr.mxu0 0.0
        %442 = vmatpush1.xpose.msra.mxu0 %v343
        %443 = vmatprep.subr.mxu0 0.0
        %444 = vmatpush1.xpose.msra.mxu0 0.0
        %445 = vmatprep.subr.mxu0 0.0
        %446 = vmatpush1.xpose.msra.mxu0 0.0
        %447 = vmatprep.subr.mxu0 0.0
        %448 = vmatpush1.xpose.msra.mxu0 0.0
        %449 = vmatprep.subr.mxu0 0.0
        %450 = vmatpush1.xpose.msra.mxu0 0.0
        %451 = vmatprep.subr.mxu0 0.0
        %452 = vmatpush1.xpose.msra.mxu0 0.0
        %453 = vmatprep.subr.mxu0 0.0
        %454 = vmatpush1.xpose.msra.mxu0 0.0
        %455 = vmatprep.subr.mxu0 0.0
        %456 = vmatpush1.xpose.msra.mxu0 0.0
        %457 = vmatprep.subr.mxu0 0.0
        %458 = vmatpush1.xpose.msra.mxu0 0.0
        %459 = vmatprep.subr.mxu0 0.0
        %460 = vmatpush1.xpose.msra.mxu0 0.0
        %461 = vmatprep.subr.mxu0 0.0
        %462 = vmatpush1.xpose.msra.mxu0 0.0
        %463 = vmatprep.subr.mxu0 0.0
        %464 = vmatpush1.xpose.msra.mxu0 0.0
        %465 = vmatprep.subr.mxu0 0.0
        %466 = vmatpush1.xpose.msra.mxu0 0.0
        %467 = vmatprep.subr.mxu0 0.0
        %468 = vmatpush1.xpose.msra.mxu0 0.0
        %469 = vmatprep.subr.mxu0 0.0
        %470 = vmatpush1.xpose.msra.mxu0 0.0
        %471 = vmatprep.subr.mxu0 0.0
        %472 = vmatpush1.xpose.msra.mxu0 0.0
        %473 = vmatprep.subr.mxu0 0.0
        %474 = vmatpush1.xpose.msra.mxu0 0.0
        %475 = vmatprep.subr.mxu0 0.0
        %476 = vmatpush1.xpose.msra.mxu0 0.0
        %477 = vmatprep.subr.mxu0 0.0
        %478 = vmatpush1.xpose.msra.mxu0 0.0
        %479 = vmatprep.subr.mxu0 0.0
        %480 = vmatpush1.xpose.msra.mxu0 0.0
        %481 = vmatprep.subr.mxu0 0.0
        %482 = vmatpush1.xpose.msra.mxu0 0.0
        %483 = vmatprep.subr.mxu0 0.0
        %484 = vmatpush1.xpose.msra.mxu0 0.0
        %485 = vmatprep.subr.mxu0 0.0
        %486 = vmatpush1.xpose.msra.mxu0 0.0
        %487 = vmatprep.subr.mxu0 0.0
        %488 = vmatpush1.xpose.msra.mxu0 0.0
        %489 = vmatprep.subr.mxu0 0.0
        %490 = vmatpush1.xpose.msra.mxu0 0.0
        %491 = vmatprep.subr.mxu0 0.0
        %492 = vmatpush1.xpose.msra.mxu0 0.0
        %493 = vmatprep.subr.mxu0 0.0
        %494 = vmatpush1.xpose.msra.mxu0 0.0
        %495 = vmatprep.subr.mxu0 0.0
        %496 = vmatpush1.xpose.msra.mxu0 0.0
        %497 = vmatprep.subr.mxu0 0.0
        %498 = vmatpush1.xpose.msra.mxu0 0.0
        %499 = vmatprep.subr.mxu0 0.0
        %500 = vmatpush1.xpose.msra.mxu0 0.0
        %501 = vmatprep.subr.mxu0 0.0
        %502 = vmatpush1.xpose.msra.mxu0 0.0
        %503 = vmatprep.mubr.f32.mxu0 0.0
        %504 = vmatmul.mubr.f32.gmra.mrb[0].mxu0 %v437
        %v505 = vpop.f32.mrb[0].mxu0
        %v506 = vadd.f32 0.0, %v505
        %v507 = vpop.f32.mrb[0].mxu0
        %508 = vdwg.mxu0
        %v509 = vlaneseq
        %v510 = vshrl.u32 %v509, 7
        %v511 = vsub.s32 0, %v510
        %v512 = vrot.slane %v429, %v511
        %514 = vbcast.lane.b32.xlu0 %v512, 256
        %v515 = vpop.permute.xlu0 %514
        %v516 = vlaneseq
        %v517 = vshrl.u32 %v516, 7
        %v518 = vsub.s32 1, %v517
        %v519 = vrot.slane %v429, %v518
        %521 = vbcast.lane.b32.xlu0 %v519, 256
        %v522 = vpop.permute.xlu0 %521
        %v523 = vlaneseq
        %v524 = vshrl.u32 %v523, 7
        %v525 = vsub.s32 2, %v524
        %v526 = vrot.slane %v429, %v525
        %528 = vbcast.lane.b32.xlu0 %v526, 256
        %v529 = vpop.permute.xlu0 %528
        %v530 = vlaneseq
        %v531 = vshrl.u32 %v530, 7
        %v532 = vsub.s32 3, %v531
        %v533 = vrot.slane %v429, %v532
        %535 = vbcast.lane.b32.xlu0 %v533, 256
        %v536 = vpop.permute.xlu0 %535
        %v537 = vlaneseq
        %v538 = vshrl.u32 %v537, 7
        %v539 = vsub.s32 4, %v538
        %v540 = vrot.slane %v429, %v539
        %542 = vbcast.lane.b32.xlu0 %v540, 256
        %v543 = vpop.permute.xlu0 %542
        %v544 = vlaneseq
        %v545 = vshrl.u32 %v544, 7
        %v546 = vsub.s32 5, %v545
        %v547 = vrot.slane %v429, %v546
        %549 = vbcast.lane.b32.xlu0 %v547, 256
        %v550 = vpop.permute.xlu0 %549
        %v551 = vlaneseq
        %v552 = vshrl.u32 %v551, 7
        %v553 = vsub.s32 6, %v552
        %v554 = vrot.slane %v429, %v553
        %556 = vbcast.lane.b32.xlu0 %v554, 256
        %v557 = vpop.permute.xlu0 %556
        %v558 = vlaneseq
        %v559 = vshrl.u32 %v558, 7
        %v560 = vsub.s32 7, %v559
        %v561 = vrot.slane %v429, %v560
        %563 = vbcast.lane.b32.xlu0 %v561, 256
        %v564 = vpop.permute.xlu0 %563
        %v565 = vlaneseq
        %v566 = vshrl.u32 %v565, 7
        %v567 = vsub.s32 0, %v566
        %v568 = vrot.slane %v434, %v567
        %570 = vbcast.lane.b32.xlu0 %v568, 256
        %v571 = vpop.permute.xlu0 %570
        %v572 = vlaneseq
        %v573 = vshrl.u32 %v572, 7
        %v574 = vsub.s32 1, %v573
        %v575 = vrot.slane %v434, %v574
        %577 = vbcast.lane.b32.xlu0 %v575, 256
        %v578 = vpop.permute.xlu0 %577
        %v579 = vlaneseq
        %v580 = vshrl.u32 %v579, 7
        %v581 = vsub.s32 2, %v580
        %v582 = vrot.slane %v434, %v581
        %584 = vbcast.lane.b32.xlu0 %v582, 256
        %v585 = vpop.permute.xlu0 %584
        %v586 = vlaneseq
        %v587 = vshrl.u32 %v586, 7
        %v588 = vsub.s32 3, %v587
        %v589 = vrot.slane %v434, %v588
        %591 = vbcast.lane.b32.xlu0 %v589, 256
        %v592 = vpop.permute.xlu0 %591
        %v593 = vlaneseq
        %v594 = vshrl.u32 %v593, 7
        %v595 = vsub.s32 4, %v594
        %v596 = vrot.slane %v434, %v595
        %598 = vbcast.lane.b32.xlu0 %v596, 256
        %v599 = vpop.permute.xlu0 %598
        %v600 = vlaneseq
        %v601 = vshrl.u32 %v600, 7
        %v602 = vsub.s32 5, %v601
        %v603 = vrot.slane %v434, %v602
        %605 = vbcast.lane.b32.xlu0 %v603, 256
        %v606 = vpop.permute.xlu0 %605
        %v607 = vlaneseq
        %v608 = vshrl.u32 %v607, 7
        %v609 = vsub.s32 6, %v608
        %v610 = vrot.slane %v434, %v609
        %612 = vbcast.lane.b32.xlu0 %v610, 256
        %v613 = vpop.permute.xlu0 %612
        %v614 = vlaneseq
        %v615 = vshrl.u32 %v614, 7
        %v616 = vsub.s32 7, %v615
        %v617 = vrot.slane %v434, %v616
        %619 = vbcast.lane.b32.xlu0 %v617, 256
        %v620 = vpop.permute.xlu0 %619
        %v621 = vadd.f32 %v515, %v506
        %v622 = vadd.f32 %v522, %v506
        %v623 = vadd.f32 %v529, %v506
        %v624 = vadd.f32 %v536, %v506
        %v625 = vadd.f32 %v543, %v506
        %v626 = vadd.f32 %v550, %v506
        %v627 = vadd.f32 %v557, %v506
        %v628 = vadd.f32 %v564, %v506
        %v629 = vadd.f32 %v571, %v506
        %v630 = vadd.f32 %v578, %v506
        %v631 = vadd.f32 %v585, %v506
        %v632 = vadd.f32 %v592, %v506
        %v633 = vadd.f32 %v599, %v506
        %v634 = vadd.f32 %v606, %v506
        %v635 = vadd.f32 %v613, %v506
        %v636 = vadd.f32 %v620, %v506
        %vm637 = vcmp.gt.f32.partialorder %v621, 0.0
        %vm638 = vcmp.gt.f32.partialorder %v622, 0.0
        %vm639 = vcmp.gt.f32.partialorder %v623, 0.0
        %vm640 = vcmp.gt.f32.partialorder %v624, 0.0
        %vm641 = vcmp.gt.f32.partialorder %v625, 0.0
        %vm642 = vcmp.gt.f32.partialorder %v626, 0.0
        %vm643 = vcmp.gt.f32.partialorder %v627, 0.0
        %vm644 = vcmp.gt.f32.partialorder %v628, 0.0
        %vm645 = vcmp.gt.f32.partialorder %v629, 0.0
        %vm646 = vcmp.gt.f32.partialorder %v630, 0.0
        %vm647 = vcmp.gt.f32.partialorder %v631, 0.0
        %vm648 = vcmp.gt.f32.partialorder %v632, 0.0
        %vm649 = vcmp.gt.f32.partialorder %v633, 0.0
        %vm650 = vcmp.gt.f32.partialorder %v634, 0.0
        %vm651 = vcmp.gt.f32.partialorder %v635, 0.0
        %vm652 = vcmp.gt.f32.partialorder %v636, 0.0
        %v653 = vmul.f32 %v621, 0.2
        %v654 = vmul.f32 %v622, 0.2
        %v655 = vmul.f32 %v623, 0.2
        %v656 = vmul.f32 %v624, 0.2
        %v657 = vmul.f32 %v625, 0.2
        %v658 = vmul.f32 %v626, 0.2
        %v659 = vmul.f32 %v627, 0.2
        %v660 = vmul.f32 %v628, 0.2
        %v661 = vmul.f32 %v629, 0.2
        %v662 = vmul.f32 %v630, 0.2
        %v663 = vmul.f32 %v631, 0.2
        %v664 = vmul.f32 %v632, 0.2
        %v665 = vmul.f32 %v633, 0.2
        %v666 = vmul.f32 %v634, 0.2
        %v667 = vmul.f32 %v635, 0.2
        %v668 = vmul.f32 %v636, 0.2
        %v669 = vsel %vm637, %v621, %v653
        %v670 = vsel %vm638, %v622, %v654
        %v671 = vsel %vm639, %v623, %v655
        %v672 = vsel %vm640, %v624, %v656
        %v673 = vsel %vm641, %v625, %v657
        %v674 = vsel %vm642, %v626, %v658
        %v675 = vsel %vm643, %v627, %v659
        %v676 = vsel %vm644, %v628, %v660
        %v677 = vsel %vm645, %v629, %v661
        %v678 = vsel %vm646, %v630, %v662
        %v679 = vsel %vm647, %v631, %v663
        %v680 = vsel %vm648, %v632, %v664
        %v681 = vsel %vm649, %v633, %v665
        %v682 = vsel %vm650, %v634, %v666
        %v683 = vsel %vm651, %v635, %v667
        %v684 = vsel %vm652, %v636, %v668
        %vm685 = vcmask 125952
        %v686 = vsel %vm685, %v669, -inf
        %687 = vmax.xlane.f32.xlu0 %v686
        %v688 = vpop.xlane.xlu0 %687
        %v689 = vsel %vm685, %v670, -inf
        %690 = vmax.xlane.f32.xlu0 %v689
        %v691 = vpop.xlane.xlu0 %690
        %v692 = vsel %vm685, %v671, -inf
        %693 = vmax.xlane.f32.xlu0 %v692
        %v694 = vpop.xlane.xlu0 %693
        %v695 = vsel %vm685, %v672, -inf
        %696 = vmax.xlane.f32.xlu0 %v695
        %v697 = vpop.xlane.xlu0 %696
        %v698 = vsel %vm685, %v673, -inf
        %699 = vmax.xlane.f32.xlu0 %v698
        %v700 = vpop.xlane.xlu0 %699
        %v701 = vsel %vm685, %v674, -inf
        %702 = vmax.xlane.f32.xlu0 %v701
        %v703 = vpop.xlane.xlu0 %702
        %v704 = vsel %vm685, %v675, -inf
        %705 = vmax.xlane.f32.xlu0 %v704
        %v706 = vpop.xlane.xlu0 %705
        %v707 = vsel %vm685, %v676, -inf
        %708 = vmax.xlane.f32.xlu0 %v707
        %v709 = vpop.xlane.xlu0 %708
        %v710 = vsel %vm685, %v677, -inf
        %711 = vmax.xlane.f32.xlu0 %v710
        %v712 = vpop.xlane.xlu0 %711
        %v713 = vsel %vm685, %v678, -inf
        %714 = vmax.xlane.f32.xlu0 %v713
        %v715 = vpop.xlane.xlu0 %714
        %v716 = vsel %vm685, %v679, -inf
        %717 = vmax.xlane.f32.xlu0 %v716
        %v718 = vpop.xlane.xlu0 %717
        %v719 = vsel %vm685, %v680, -inf
        %720 = vmax.xlane.f32.xlu0 %v719
        %v721 = vpop.xlane.xlu0 %720
        %v722 = vsel %vm685, %v681, -inf
        %723 = vmax.xlane.f32.xlu0 %v722
        %v724 = vpop.xlane.xlu0 %723
        %v725 = vsel %vm685, %v682, -inf
        %726 = vmax.xlane.f32.xlu0 %v725
        %v727 = vpop.xlane.xlu0 %726
        %v728 = vsel %vm685, %v683, -inf
        %729 = vmax.xlane.f32.xlu0 %v728
        %v730 = vpop.xlane.xlu0 %729
        %v731 = vsel %vm685, %v684, -inf
        %732 = vmax.xlane.f32.xlu0 %v731
        %v733 = vpop.xlane.xlu0 %732
        %v734 = vsub.f32 %v669, %v688
        %v735 = vsub.f32 %v670, %v691
        %v736 = vsub.f32 %v671, %v694
        %v737 = vsub.f32 %v672, %v697
        %v738 = vsub.f32 %v673, %v700
        %v739 = vsub.f32 %v674, %v703
        %v740 = vsub.f32 %v675, %v706
        %v741 = vsub.f32 %v676, %v709
        %v742 = vsub.f32 %v677, %v712
        %v743 = vsub.f32 %v678, %v715
        %v744 = vsub.f32 %v679, %v718
        %v745 = vsub.f32 %v680, %v721
        %v746 = vsub.f32 %v681, %v724
        %v747 = vsub.f32 %v682, %v727
        %v748 = vsub.f32 %v683, %v730
        %v749 = vsub.f32 %v684, %v733
        %v750 = vmul.f32 %v734, 1.442695
        %v751 = vpow.pop %v750
        %v752 = vmul.f32 %v735, 1.442695
        %v753 = vpow.pop %v752
        %v754 = vmul.f32 %v736, 1.442695
        %v755 = vpow.pop %v754
        %v756 = vmul.f32 %v737, 1.442695
        %v757 = vpow.pop %v756
        %v758 = vmul.f32 %v738, 1.442695
        %v759 = vpow.pop %v758
        %v760 = vmul.f32 %v739, 1.442695
        %v761 = vpow.pop %v760
        %v762 = vmul.f32 %v740, 1.442695
        %v763 = vpow.pop %v762
        %v764 = vmul.f32 %v741, 1.442695
        %v765 = vpow.pop %v764
        %v766 = vmul.f32 %v742, 1.442695
        %v767 = vpow.pop %v766
        %v768 = vmul.f32 %v743, 1.442695
        %v769 = vpow.pop %v768
        %v770 = vmul.f32 %v744, 1.442695
        %v771 = vpow.pop %v770
        %v772 = vmul.f32 %v745, 1.442695
        %v773 = vpow.pop %v772
        %v774 = vmul.f32 %v746, 1.442695
        %v775 = vpow.pop %v774
        %v776 = vmul.f32 %v747, 1.442695
        %v777 = vpow.pop %v776
        %v778 = vmul.f32 %v748, 1.442695
        %v779 = vpow.pop %v778
        %v780 = vmul.f32 %v749, 1.442695
        %v781 = vpow.pop %v780
        %v782 = vsel %vm685, %v751, 0.0
        %783 = vadd.xlane.f32.xlu0 %v782
        %v784 = vpop.xlane.xlu0 %783
        %v785 = vsel %vm685, %v753, 0.0
        %786 = vadd.xlane.f32.xlu0 %v785
        %v787 = vpop.xlane.xlu0 %786
        %v788 = vsel %vm685, %v755, 0.0
        %789 = vadd.xlane.f32.xlu0 %v788
        %v790 = vpop.xlane.xlu0 %789
        %v791 = vsel %vm685, %v757, 0.0
        %792 = vadd.xlane.f32.xlu0 %v791
        %v793 = vpop.xlane.xlu0 %792
        %v794 = vsel %vm685, %v759, 0.0
        %795 = vadd.xlane.f32.xlu0 %v794
        %v796 = vpop.xlane.xlu0 %795
        %v797 = vsel %vm685, %v761, 0.0
        %798 = vadd.xlane.f32.xlu0 %v797
        %v799 = vpop.xlane.xlu0 %798
        %v800 = vsel %vm685, %v763, 0.0
        %801 = vadd.xlane.f32.xlu0 %v800
        %v802 = vpop.xlane.xlu0 %801
        %v803 = vsel %vm685, %v765, 0.0
        %804 = vadd.xlane.f32.xlu0 %v803
        %v805 = vpop.xlane.xlu0 %804
        %v806 = vsel %vm685, %v767, 0.0
        %807 = vadd.xlane.f32.xlu0 %v806
        %v808 = vpop.xlane.xlu0 %807
        %v809 = vsel %vm685, %v769, 0.0
        %810 = vadd.xlane.f32.xlu0 %v809
        %v811 = vpop.xlane.xlu0 %810
        %v812 = vsel %vm685, %v771, 0.0
        %813 = vadd.xlane.f32.xlu0 %v812
        %v814 = vpop.xlane.xlu0 %813
        %v815 = vsel %vm685, %v773, 0.0
        %816 = vadd.xlane.f32.xlu0 %v815
        %v817 = vpop.xlane.xlu0 %816
        %v818 = vsel %vm685, %v775, 0.0
        %819 = vadd.xlane.f32.xlu0 %v818
        %v820 = vpop.xlane.xlu0 %819
        %v821 = vsel %vm685, %v777, 0.0
        %822 = vadd.xlane.f32.xlu0 %v821
        %v823 = vpop.xlane.xlu0 %822
        %v824 = vsel %vm685, %v779, 0.0
        %825 = vadd.xlane.f32.xlu0 %v824
        %v826 = vpop.xlane.xlu0 %825
        %v827 = vsel %vm685, %v781, 0.0
        %828 = vadd.xlane.f32.xlu0 %v827
        %v829 = vpop.xlane.xlu0 %828
        %v830 = vrcp.pop %v784
        %v831 = vrcp.pop %v787
        %v832 = vrcp.pop %v790
        %v833 = vrcp.pop %v793
        %v834 = vrcp.pop %v796
        %v835 = vrcp.pop %v799
        %v836 = vrcp.pop %v802
        %v837 = vrcp.pop %v805
        %v838 = vrcp.pop %v808
        %v839 = vrcp.pop %v811
        %v840 = vrcp.pop %v814
        %v841 = vrcp.pop %v817
        %v842 = vrcp.pop %v820
        %v843 = vrcp.pop %v823
        %v844 = vrcp.pop %v826
        %v845 = vrcp.pop %v829
        %v846 = vmul.f32 %v751, %v830
        %v847 = vmul.f32 %v753, %v831
        %v848 = vmul.f32 %v755, %v832
        %v849 = vmul.f32 %v757, %v833
        %v850 = vmul.f32 %v759, %v834
        %v851 = vmul.f32 %v761, %v835
        %v852 = vmul.f32 %v763, %v836
        %v853 = vmul.f32 %v765, %v837
        %v854 = vmul.f32 %v767, %v838
        %v855 = vmul.f32 %v769, %v839
        %v856 = vmul.f32 %v771, %v840
        %v857 = vmul.f32 %v773, %v841
        %v858 = vmul.f32 %v775, %v842
        %v859 = vmul.f32 %v777, %v843
        %v860 = vmul.f32 %v779, %v844
        %v861 = vmul.f32 %v781, %v845
        %v878 = vrot.slane %v847, 7
        %vm879 = vcmask 1041409
        %v880 = vsel %vm879, %v878, %v846
        %v881 = vrot.slane %v848, 6
        %vm882 = vcmask 1042434
        %v883 = vsel %vm882, %v881, %v880
        %v884 = vrot.slane %v849, 5
        %vm885 = vcmask 1043459
        %v886 = vsel %vm885, %v884, %v883
        %v887 = vrot.slane %v850, 4
        %vm888 = vcmask 1044484
        %v889 = vsel %vm888, %v887, %v886
        %v890 = vrot.slane %v851, 3
        %vm891 = vcmask 1045509
        %v892 = vsel %vm891, %v890, %v889
        %v893 = vrot.slane %v852, 2
        %vm894 = vcmask 1046534
        %v895 = vsel %vm894, %v893, %v892
        %v896 = vrot.slane %v853, 1
        %vm897 = vcmask 1047559
        %v898 = vsel %vm897, %v896, %v895
        %v899 = vrot.slane %v855, 7
        %v900 = vsel %vm879, %v899, %v854
        %v901 = vrot.slane %v856, 6
        %v902 = vsel %vm882, %v901, %v900
        %v903 = vrot.slane %v857, 5
        %v904 = vsel %vm885, %v903, %v902
        %v905 = vrot.slane %v858, 4
        %v906 = vsel %vm888, %v905, %v904
        %v907 = vrot.slane %v859, 3
        %v908 = vsel %vm891, %v907, %v906
        %v909 = vrot.slane %v860, 2
        %v910 = vsel %vm894, %v909, %v908
        %v911 = vrot.slane %v861, 1
        %v912 = vsel %vm897, %v911, %v910
        %vm913 = vcmask 130048
        %v914 = vsel %vm913, %v898, 0
        %v916 = vsel %vm913, %v912, 0
        %918 = vmatprep.subr.mxu0 0.0
        %919 = vmatpush1.msra.mxu0 %v338
        %920 = vmatprep.subr.mxu0 0.0
        %921 = vmatpush1.msra.mxu0 %v343
        %922 = vmatprep.subr.mxu0 0.0
        %923 = vmatpush1.msra.mxu0 0.0
        %924 = vmatprep.subr.mxu0 0.0
        %925 = vmatpush1.msra.mxu0 0.0
        %926 = vmatprep.subr.mxu0 0.0
        %927 = vmatpush1.msra.mxu0 0.0
        %928 = vmatprep.subr.mxu0 0.0
        %929 = vmatpush1.msra.mxu0 0.0
        %930 = vmatprep.subr.mxu0 0.0
        %931 = vmatpush1.msra.mxu0 0.0
        %932 = vmatprep.subr.mxu0 0.0
        %933 = vmatpush1.msra.mxu0 0.0
        %934 = vmatprep.subr.mxu0 0.0
        %935 = vmatpush1.msra.mxu0 0.0
        %936 = vmatprep.subr.mxu0 0.0
        %937 = vmatpush1.msra.mxu0 0.0
        %938 = vmatprep.subr.mxu0 0.0
        %939 = vmatpush1.msra.mxu0 0.0
        %940 = vmatprep.subr.mxu0 0.0
        %941 = vmatpush1.msra.mxu0 0.0
        %942 = vmatprep.subr.mxu0 0.0
        %943 = vmatpush1.msra.mxu0 0.0
        %944 = vmatprep.subr.mxu0 0.0
        %945 = vmatpush1.msra.mxu0 0.0
        %946 = vmatprep.subr.mxu0 0.0
        %947 = vmatpush1.msra.mxu0 0.0
        %948 = vmatprep.subr.mxu0 0.0
        %949 = vmatpush1.msra.mxu0 0.0
        %950 = vmatprep.subr.mxu0 0.0
        %951 = vmatpush1.msra.mxu0 0.0
        %952 = vmatprep.subr.mxu0 0.0
        %953 = vmatpush1.msra.mxu0 0.0
        %954 = vmatprep.subr.mxu0 0.0
        %955 = vmatpush1.msra.mxu0 0.0
        %956 = vmatprep.subr.mxu0 0.0
        %957 = vmatpush1.msra.mxu0 0.0
        %958 = vmatprep.subr.mxu0 0.0
        %959 = vmatpush1.msra.mxu0 0.0
        %960 = vmatprep.subr.mxu0 0.0
        %961 = vmatpush1.msra.mxu0 0.0
        %962 = vmatprep.subr.mxu0 0.0
        %963 = vmatpush1.msra.mxu0 0.0
        %964 = vmatprep.subr.mxu0 0.0
        %965 = vmatpush1.msra.mxu0 0.0
        %966 = vmatprep.subr.mxu0 0.0
        %967 = vmatpush1.msra.mxu0 0.0
        %968 = vmatprep.subr.mxu0 0.0
        %969 = vmatpush1.msra.mxu0 0.0
        %970 = vmatprep.subr.mxu0 0.0
        %971 = vmatpush1.msra.mxu0 0.0
        %972 = vmatprep.subr.mxu0 0.0
        %973 = vmatpush1.msra.mxu0 0.0
        %974 = vmatprep.subr.mxu0 0.0
        %975 = vmatpush1.msra.mxu0 0.0
        %976 = vmatprep.subr.mxu0 0.0
        %977 = vmatpush1.msra.mxu0 0.0
        %978 = vmatprep.subr.mxu0 0.0
        %979 = vmatpush1.msra.mxu0 0.0
        %980 = vmatprep.subr.mxu0 0.0
        %981 = vmatpush1.msra.mxu0 0.0
        %982 = vmatprep.mubr.f32.mxu0 0.0
        %983 = vmatmul.mubr.f32.gmra.mrb[0].mxu0 %v914
        %v984 = vpop.f32.mrb[0].mxu0
        %v985 = vadd.f32 0.0, %v984
        %v986 = vpop.f32.mrb[0].mxu0
        %987 = vmatprep.mubr.f32.mxu0 0.0
        %988 = vmatmul.mubr.f32.gmra.mrb[0].mxu0 %v916
        %v989 = vpop.f32.mrb[0].mxu0
        %v990 = vadd.f32 0.0, %v989
        %v991 = vpop.f32.mrb[0].mxu0
        %992 = vdwg.mxu0
        %v993 = vrot.slane %v846, 1
        %v994 = vsel %vm879, %v847, %v993
        %v995 = vrot.slane %v848, 7
        %v996 = vsel %vm882, %v995, %v994
        %v997 = vrot.slane %v849, 6
        %v998 = vsel %vm885, %v997, %v996
        %v999 = vrot.slane %v850, 5
        %v1000 = vsel %vm888, %v999, %v998
        %v1001 = vrot.slane %v851, 4
        %v1002 = vsel %vm891, %v1001, %v1000
        %v1003 = vrot.slane %v852, 3
        %v1004 = vsel %vm894, %v1003, %v1002
        %v1005 = vrot.slane %v853, 2
        %v1006 = vsel %vm897, %v1005, %v1004
        %v1007 = vrot.slane %v854, 1
        %v1008 = vsel %vm879, %v855, %v1007
        %v1009 = vrot.slane %v856, 7
        %v1010 = vsel %vm882, %v1009, %v1008
        %v1011 = vrot.slane %v857, 6
        %v1012 = vsel %vm885, %v1011, %v1010
        %v1013 = vrot.slane %v858, 5
        %v1014 = vsel %vm888, %v1013, %v1012
        %v1015 = vrot.slane %v859, 4
        %v1016 = vsel %vm891, %v1015, %v1014
        %v1017 = vrot.slane %v860, 3
        %v1018 = vsel %vm894, %v1017, %v1016
        %v1019 = vrot.slane %v861, 2
        %v1020 = vsel %vm897, %v1019, %v1018
        %1023 = vrot.lane.b32.xlu0 %v338, 96
        %v1024 = vpop.permute.xlu0 %1023
        %1025 = vrot.lane.b32.xlu0 %v343, 96
        %v1026 = vpop.permute.xlu0 %1025
        %v1029 = vsel %vm913, %v1006, 0
        %v1031 = vsel %vm913, %v1020, 0
        %1033 = vmatprep.subr.mxu0 0.0
        %1034 = vmatpush1.msra.mxu0 %v1024
        %1035 = vmatprep.subr.mxu0 0.0
        %1036 = vmatpush1.msra.mxu0 %v1026
        %1037 = vmatprep.subr.mxu0 0.0
        %1038 = vmatpush1.msra.mxu0 0.0
        %1039 = vmatprep.subr.mxu0 0.0
        %1040 = vmatpush1.msra.mxu0 0.0
        %1041 = vmatprep.subr.mxu0 0.0
        %1042 = vmatpush1.msra.mxu0 0.0
        %1043 = vmatprep.subr.mxu0 0.0
        %1044 = vmatpush1.msra.mxu0 0.0
        %1045 = vmatprep.subr.mxu0 0.0
        %1046 = vmatpush1.msra.mxu0 0.0
        %1047 = vmatprep.subr.mxu0 0.0
        %1048 = vmatpush1.msra.mxu0 0.0
        %1049 = vmatprep.subr.mxu0 0.0
        %1050 = vmatpush1.msra.mxu0 0.0
        %1051 = vmatprep.subr.mxu0 0.0
        %1052 = vmatpush1.msra.mxu0 0.0
        %1053 = vmatprep.subr.mxu0 0.0
        %1054 = vmatpush1.msra.mxu0 0.0
        %1055 = vmatprep.subr.mxu0 0.0
        %1056 = vmatpush1.msra.mxu0 0.0
        %1057 = vmatprep.subr.mxu0 0.0
        %1058 = vmatpush1.msra.mxu0 0.0
        %1059 = vmatprep.subr.mxu0 0.0
        %1060 = vmatpush1.msra.mxu0 0.0
        %1061 = vmatprep.subr.mxu0 0.0
        %1062 = vmatpush1.msra.mxu0 0.0
        %1063 = vmatprep.subr.mxu0 0.0
        %1064 = vmatpush1.msra.mxu0 0.0
        %1065 = vmatprep.subr.mxu0 0.0
        %1066 = vmatpush1.msra.mxu0 0.0
        %1067 = vmatprep.subr.mxu0 0.0
        %1068 = vmatpush1.msra.mxu0 0.0
        %1069 = vmatprep.subr.mxu0 0.0
        %1070 = vmatpush1.msra.mxu0 0.0
        %1071 = vmatprep.subr.mxu0 0.0
        %1072 = vmatpush1.msra.mxu0 0.0
        %1073 = vmatprep.subr.mxu0 0.0
        %1074 = vmatpush1.msra.mxu0 0.0
        %1075 = vmatprep.subr.mxu0 0.0
        %1076 = vmatpush1.msra.mxu0 0.0
        %1077 = vmatprep.subr.mxu0 0.0
        %1078 = vmatpush1.msra.mxu0 0.0
        %1079 = vmatprep.subr.mxu0 0.0
        %1080 = vmatpush1.msra.mxu0 0.0
        %1081 = vmatprep.subr.mxu0 0.0
        %1082 = vmatpush1.msra.mxu0 0.0
        %1083 = vmatprep.subr.mxu0 0.0
        %1084 = vmatpush1.msra.mxu0 0.0
        %1085 = vmatprep.subr.mxu0 0.0
        %1086 = vmatpush1.msra.mxu0 0.0
        %1087 = vmatprep.subr.mxu0 0.0
        %1088 = vmatpush1.msra.mxu0 0.0
        %1089 = vmatprep.subr.mxu0 0.0
        %1090 = vmatpush1.msra.mxu0 0.0
        %1091 = vmatprep.subr.mxu0 0.0
        %1092 = vmatpush1.msra.mxu0 0.0
        %1093 = vmatprep.subr.mxu0 0.0
        %1094 = vmatpush1.msra.mxu0 0.0
        %1095 = vmatprep.subr.mxu0 0.0
        %1096 = vmatpush1.msra.mxu0 0.0
        %1097 = vmatprep.mubr.f32.mxu0 0.0
        %1098 = vmatmul.mubr.f32.gmra.mrb[0].mxu0 %v1029
        %v1099 = vpop.f32.mrb[0].mxu0
        %v1100 = vadd.f32 0.0, %v1099
        %v1101 = vpop.f32.mrb[0].mxu0
        %1102 = vmatprep.mubr.f32.mxu0 0.0
        %1103 = vmatmul.mubr.f32.gmra.mrb[0].mxu0 %v1031
        %v1104 = vpop.f32.mrb[0].mxu0
        %v1105 = vadd.f32 0.0, %v1104
        %v1106 = vpop.f32.mrb[0].mxu0
        %1107 = vdwg.mxu0
        %v1108 = vrot.slane %v846, 2
        %v1109 = vrot.slane %v847, 1
        %v1110 = vsel %vm879, %v1109, %v1108
        %v1111 = vsel %vm882, %v848, %v1110
        %v1112 = vrot.slane %v849, 7
        %v1113 = vsel %vm885, %v1112, %v1111
        %v1114 = vrot.slane %v850, 6
        %v1115 = vsel %vm888, %v1114, %v1113
        %v1116 = vrot.slane %v851, 5
        %v1117 = vsel %vm891, %v1116, %v1115
        %v1118 = vrot.slane %v852, 4
        %v1119 = vsel %vm894, %v1118, %v1117
        %v1120 = vrot.slane %v853, 3
        %v1121 = vsel %vm897, %v1120, %v1119
        %v1122 = vrot.slane %v854, 2
        %v1123 = vrot.slane %v855, 1
        %v1124 = vsel %vm879, %v1123, %v1122
        %v1125 = vsel %vm882, %v856, %v1124
        %v1126 = vrot.slane %v857, 7
        %v1127 = vsel %vm885, %v1126, %v1125
        %v1128 = vrot.slane %v858, 6
        %v1129 = vsel %vm888, %v1128, %v1127
        %v1130 = vrot.slane %v859, 5
        %v1131 = vsel %vm891, %v1130, %v1129
        %v1132 = vrot.slane %v860, 4
        %v1133 = vsel %vm894, %v1132, %v1131
        %v1134 = vrot.slane %v861, 3
        %v1135 = vsel %vm897, %v1134, %v1133
        %1136 = vrot.lane.b32.xlu0 %v338, 64
        %v1137 = vpop.permute.xlu0 %1136
        %1138 = vrot.lane.b32.xlu0 %v343, 64
        %v1139 = vpop.permute.xlu0 %1138
        %v1142 = vsel %vm913, %v1121, 0
        %v1144 = vsel %vm913, %v1135, 0
        %1146 = vmatprep.subr.mxu0 0.0
        %1147 = vmatpush1.msra.mxu0 %v1137
        %1148 = vmatprep.subr.mxu0 0.0
        %1149 = vmatpush1.msra.mxu0 %v1139
        %1150 = vmatprep.subr.mxu0 0.0
        %1151 = vmatpush1.msra.mxu0 0.0
        %1152 = vmatprep.subr.mxu0 0.0
        %1153 = vmatpush1.msra.mxu0 0.0
        %1154 = vmatprep.subr.mxu0 0.0
        %1155 = vmatpush1.msra.mxu0 0.0
        %1156 = vmatprep.subr.mxu0 0.0
        %1157 = vmatpush1.msra.mxu0 0.0
        %1158 = vmatprep.subr.mxu0 0.0
        %1159 = vmatpush1.msra.mxu0 0.0
        %1160 = vmatprep.subr.mxu0 0.0
        %1161 = vmatpush1.msra.mxu0 0.0
        %1162 = vmatprep.subr.mxu0 0.0
        %1163 = vmatpush1.msra.mxu0 0.0
        %1164 = vmatprep.subr.mxu0 0.0
        %1165 = vmatpush1.msra.mxu0 0.0
        %1166 = vmatprep.subr.mxu0 0.0
        %1167 = vmatpush1.msra.mxu0 0.0
        %1168 = vmatprep.subr.mxu0 0.0
        %1169 = vmatpush1.msra.mxu0 0.0
        %1170 = vmatprep.subr.mxu0 0.0
        %1171 = vmatpush1.msra.mxu0 0.0
        %1172 = vmatprep.subr.mxu0 0.0
        %1173 = vmatpush1.msra.mxu0 0.0
        %1174 = vmatprep.subr.mxu0 0.0
        %1175 = vmatpush1.msra.mxu0 0.0
        %1176 = vmatprep.subr.mxu0 0.0
        %1177 = vmatpush1.msra.mxu0 0.0
        %1178 = vmatprep.subr.mxu0 0.0
        %1179 = vmatpush1.msra.mxu0 0.0
        %1180 = vmatprep.subr.mxu0 0.0
        %1181 = vmatpush1.msra.mxu0 0.0
        %1182 = vmatprep.subr.mxu0 0.0
        %1183 = vmatpush1.msra.mxu0 0.0
        %1184 = vmatprep.subr.mxu0 0.0
        %1185 = vmatpush1.msra.mxu0 0.0
        %1186 = vmatprep.subr.mxu0 0.0
        %1187 = vmatpush1.msra.mxu0 0.0
        %1188 = vmatprep.subr.mxu0 0.0
        %1189 = vmatpush1.msra.mxu0 0.0
        %1190 = vmatprep.subr.mxu0 0.0
        %1191 = vmatpush1.msra.mxu0 0.0
        %1192 = vmatprep.subr.mxu0 0.0
        %1193 = vmatpush1.msra.mxu0 0.0
        %1194 = vmatprep.subr.mxu0 0.0
        %1195 = vmatpush1.msra.mxu0 0.0
        %1196 = vmatprep.subr.mxu0 0.0
        %1197 = vmatpush1.msra.mxu0 0.0
        %1198 = vmatprep.subr.mxu0 0.0
        %1199 = vmatpush1.msra.mxu0 0.0
        %1200 = vmatprep.subr.mxu0 0.0
        %1201 = vmatpush1.msra.mxu0 0.0
        %1202 = vmatprep.subr.mxu0 0.0
        %1203 = vmatpush1.msra.mxu0 0.0
        %1204 = vmatprep.subr.mxu0 0.0
        %1205 = vmatpush1.msra.mxu0 0.0
        %1206 = vmatprep.subr.mxu0 0.0
        %1207 = vmatpush1.msra.mxu0 0.0
        %1208 = vmatprep.subr.mxu0 0.0
        %1209 = vmatpush1.msra.mxu0 0.0
        %1210 = vmatprep.mubr.f32.mxu0 0.0
        %1211 = vmatmul.mubr.f32.gmra.mrb[0].mxu0 %v1142
        %v1212 = vpop.f32.mrb[0].mxu0
        %v1213 = vadd.f32 0.0, %v1212
        %v1214 = vpop.f32.mrb[0].mxu0
        %1215 = vmatprep.mubr.f32.mxu0 0.0
        %1216 = vmatmul.mubr.f32.gmra.mrb[0].mxu0 %v1144
        %v1217 = vpop.f32.mrb[0].mxu0
        %v1218 = vadd.f32 0.0, %v1217
        %v1219 = vpop.f32.mrb[0].mxu0
        %1220 = vdwg.mxu0
        %v1221 = vrot.slane %v846, 3
        %v1222 = vrot.slane %v847, 2
        %v1223 = vsel %vm879, %v1222, %v1221
        %v1224 = vrot.slane %v848, 1
        %v1225 = vsel %vm882, %v1224, %v1223
        %v1226 = vsel %vm885, %v849, %v1225
        %v1227 = vrot.slane %v850, 7
        %v1228 = vsel %vm888, %v1227, %v1226
        %v1229 = vrot.slane %v851, 6
        %v1230 = vsel %vm891, %v1229, %v1228
        %v1231 = vrot.slane %v852, 5
        %v1232 = vsel %vm894, %v1231, %v1230
        %v1233 = vrot.slane %v853, 4
        %v1234 = vsel %vm897, %v1233, %v1232
        %v1235 = vrot.slane %v854, 3
        %v1236 = vrot.slane %v855, 2
        %v1237 = vsel %vm879, %v1236, %v1235
        %v1238 = vrot.slane %v856, 1
        %v1239 = vsel %vm882, %v1238, %v1237
        %v1240 = vsel %vm885, %v857, %v1239
        %v1241 = vrot.slane %v858, 7
        %v1242 = vsel %vm888, %v1241, %v1240
        %v1243 = vrot.slane %v859, 6
        %v1244 = vsel %vm891, %v1243, %v1242
        %v1245 = vrot.slane %v860, 5
        %v1246 = vsel %vm894, %v1245, %v1244
        %v1247 = vrot.slane %v861, 4
        %v1248 = vsel %vm897, %v1247, %v1246
        %1249 = vrot.lane.b32.xlu0 %v338, 32
        %v1250 = vpop.permute.xlu0 %1249
        %1251 = vrot.lane.b32.xlu0 %v343, 32
        %v1252 = vpop.permute.xlu0 %1251
        %v1255 = vsel %vm913, %v1234, 0
        %v1257 = vsel %vm913, %v1248, 0
        %1259 = vmatprep.subr.mxu0 0.0
        %1260 = vmatpush1.msra.mxu0 %v1250
        %1261 = vmatprep.subr.mxu0 0.0
        %1262 = vmatpush1.msra.mxu0 %v1252
        %1263 = vmatprep.subr.mxu0 0.0
        %1264 = vmatpush1.msra.mxu0 0.0
        %1265 = vmatprep.subr.mxu0 0.0
        %1266 = vmatpush1.msra.mxu0 0.0
        %1267 = vmatprep.subr.mxu0 0.0
        %1268 = vmatpush1.msra.mxu0 0.0
        %1269 = vmatprep.subr.mxu0 0.0
        %1270 = vmatpush1.msra.mxu0 0.0
        %1271 = vmatprep.subr.mxu0 0.0
        %1272 = vmatpush1.msra.mxu0 0.0
        %1273 = vmatprep.subr.mxu0 0.0
        %1274 = vmatpush1.msra.mxu0 0.0
        %1275 = vmatprep.subr.mxu0 0.0
        %1276 = vmatpush1.msra.mxu0 0.0
        %1277 = vmatprep.subr.mxu0 0.0
        %1278 = vmatpush1.msra.mxu0 0.0
        %1279 = vmatprep.subr.mxu0 0.0
        %1280 = vmatpush1.msra.mxu0 0.0
        %1281 = vmatprep.subr.mxu0 0.0
        %1282 = vmatpush1.msra.mxu0 0.0
        %1283 = vmatprep.subr.mxu0 0.0
        %1284 = vmatpush1.msra.mxu0 0.0
        %1285 = vmatprep.subr.mxu0 0.0
        %1286 = vmatpush1.msra.mxu0 0.0
        %1287 = vmatprep.subr.mxu0 0.0
        %1288 = vmatpush1.msra.mxu0 0.0
        %1289 = vmatprep.subr.mxu0 0.0
        %1290 = vmatpush1.msra.mxu0 0.0
        %1291 = vmatprep.subr.mxu0 0.0
        %1292 = vmatpush1.msra.mxu0 0.0
        %1293 = vmatprep.subr.mxu0 0.0
        %1294 = vmatpush1.msra.mxu0 0.0
        %1295 = vmatprep.subr.mxu0 0.0
        %1296 = vmatpush1.msra.mxu0 0.0
        %1297 = vmatprep.subr.mxu0 0.0
        %1298 = vmatpush1.msra.mxu0 0.0
        %1299 = vmatprep.subr.mxu0 0.0
        %1300 = vmatpush1.msra.mxu0 0.0
        %1301 = vmatprep.subr.mxu0 0.0
        %1302 = vmatpush1.msra.mxu0 0.0
        %1303 = vmatprep.subr.mxu0 0.0
        %1304 = vmatpush1.msra.mxu0 0.0
        %1305 = vmatprep.subr.mxu0 0.0
        %1306 = vmatpush1.msra.mxu0 0.0
        %1307 = vmatprep.subr.mxu0 0.0
        %1308 = vmatpush1.msra.mxu0 0.0
        %1309 = vmatprep.subr.mxu0 0.0
        %1310 = vmatpush1.msra.mxu0 0.0
        %1311 = vmatprep.subr.mxu0 0.0
        %1312 = vmatpush1.msra.mxu0 0.0
        %1313 = vmatprep.subr.mxu0 0.0
        %1314 = vmatpush1.msra.mxu0 0.0
        %1315 = vmatprep.subr.mxu0 0.0
        %1316 = vmatpush1.msra.mxu0 0.0
        %1317 = vmatprep.subr.mxu0 0.0
        %1318 = vmatpush1.msra.mxu0 0.0
        %1319 = vmatprep.subr.mxu0 0.0
        %1320 = vmatpush1.msra.mxu0 0.0
        %1321 = vmatprep.subr.mxu0 0.0
        %1322 = vmatpush1.msra.mxu0 0.0
        %1323 = vmatprep.mubr.f32.mxu0 0.0
        %1324 = vmatmul.mubr.f32.gmra.mrb[0].mxu0 %v1255
        %v1325 = vpop.f32.mrb[0].mxu0
        %v1326 = vadd.f32 0.0, %v1325
        %v1327 = vpop.f32.mrb[0].mxu0
        %1328 = vmatprep.mubr.f32.mxu0 0.0
        %1329 = vmatmul.mubr.f32.gmra.mrb[0].mxu0 %v1257
        %v1330 = vpop.f32.mrb[0].mxu0
        %v1331 = vadd.f32 0.0, %v1330
        %v1332 = vpop.f32.mrb[0].mxu0
        %1333 = vdwg.mxu0
        %1336 = vrot.lane.b32.xlu0 %v1006, 16
        %v1337 = vpop.permute.xlu0 %1336
        %1338 = vrot.lane.b32.xlu0 %v1020, 16
        %v1339 = vpop.permute.xlu0 %1338
        %1342 = vrot.lane.b32.xlu0 %v1121, 32
        %v1343 = vpop.permute.xlu0 %1342
        %1344 = vrot.lane.b32.xlu0 %v1135, 32
        %v1345 = vpop.permute.xlu0 %1344
        %1348 = vrot.lane.b32.xlu0 %v1234, 48
        %v1349 = vpop.permute.xlu0 %1348
        %1350 = vrot.lane.b32.xlu0 %v1248, 48
        %v1351 = vpop.permute.xlu0 %1350
        %v1354 = vsel %vm913, %v898, %v1337
        %v1355 = vsel %vm913, %v912, %v1339
        %vm1356 = vcmask 261120
        %v1357 = vsel %vm1356, %v1354, %v1343
        %v1358 = vsel %vm1356, %v1355, %v1345
        %vm1359 = vcmask 392192
        %v1360 = vsel %vm1359, %v1357, %v1349
        %v1361 = vsel %vm1359, %v1358, %v1351
        %vm1362 = vcmask 523264
        %1363 = vst.msk [vmem:[%s255] sm:$0xff] %vm1362, %v1360
        %1364 = vst.msk [vmem:[%s255 + $0x8] sm:$0xff] %vm1362, %v1361
        %1367 = vrot.lane.b32.xlu0 %v1100, 32
        %v1368 = vpop.permute.xlu0 %1367
        %1369 = vrot.lane.b32.xlu0 %v1105, 32
        %v1370 = vpop.permute.xlu0 %1369
        %1375 = vrot.lane.b32.xlu0 %v1213, 64
        %v1376 = vpop.permute.xlu0 %1375
        %1377 = vrot.lane.b32.xlu0 %v1218, 64
        %v1378 = vpop.permute.xlu0 %1377
        %1383 = vrot.lane.b32.xlu0 %v1326, 96
        %v1384 = vpop.permute.xlu0 %1383
        %1385 = vrot.lane.b32.xlu0 %v1331, 96
        %v1386 = vpop.permute.xlu0 %1385
        %v1389 = vsel %vm1356, %v985, %v1368
        %v1390 = vsel %vm1356, %v990, %v1370
        %v1391 = vsel %vm1362, %v1389, %v1376
        %v1392 = vsel %vm1362, %v1390, %v1378
        %vm1393 = vcmask 785408
        %v1394 = vsel %vm1393, %v1391, %v1384
        %v1395 = vsel %vm1393, %v1392, %v1386
        %v1397 = vlaneseq
        %v1398 = vshrl.u32 %v1397, 7
        %v1399 = vsub.s32 0, %v1398
        %v1400 = vrot.slane %v438, %v1399
        %v1402 = vadd.f32 %v1394, %v1400
        %v1403 = vadd.f32 %v1395, %v1400
        %1404 = vst [vmem:[%s248] sm:$0xff] %v1402
        %1405 = vst [vmem:[%s248 + $0x8] sm:$0xff] %v1403
        %s1406 = sand.u32 %s142, 1
        %s1407 = scalar_lea.sflag [#allocation3], %s1406
        %s1408 = sand.u32 %s142, 1
        %s1409 = smul.addr %s1408, 16
        %s1410 = scalar_lea.vmem [#allocation2], %s1409
        %s1411 = sand.u32 %s168, 1
        %s1412 = scalar_lea.sflag [#allocation5], %s1411
        %s1413 = sand.u32 %s168, 1
        %s1414 = smul.addr %s1413, 16
        %s1415 = scalar_lea.vmem [#allocation4], %s1414
        // Predicated region
        $region41: #{tpu_custom_call.1} parent=39 // pred_check
          %p1416 = pneg %p152
        $region42: #{tpu_custom_call.1} parent=39 // pred_check_branch
          %1418 = sbr.rel (%p1416) target = $region44
        $region43: #{tpu_custom_call.1} parent=39 // pred_region
          %s1420 = ssub.s32 256, 256
          %1421 = vsyncadd %s1407, %s1420
          %s1422 = smul.addr %s24, 2
          %s1423 = smul.addr %s1422, 128
          %s1424 = scalar_lea.hbm %s5, %s1423
          %s1425 = sshll.u32 %s1410, 4
          %s1426 = int_to_ptr.vmem [resolvable:$true] %s1425
          %1431 = dma.vmem_to_hbm [thread:$0]  %s1426, 256, %s1424, %s1407, 128, 128, 8
        $region44: #{tpu_custom_call.1} parent=39 // pred_fallthru
          _
        // Predicated region
        $region45: #{tpu_custom_call.1} parent=39 // pred_check
          %p1432 = pneg %p178
        $region46: #{tpu_custom_call.1} parent=39 // pred_check_branch
          %1434 = sbr.rel (%p1432) target = $region48
        $region47: #{tpu_custom_call.1} parent=39 // pred_region
          %s1436 = ssub.s32 256, 256
          %1437 = vsyncadd %s1412, %s1436
          %s1438 = smul.addr %s24, 2
          %s1439 = smul.addr %s1438, 128
          %s1440 = scalar_lea.hbm %s6, %s1439
          %s1441 = sshll.u32 %s1415, 4
          %s1442 = int_to_ptr.vmem [resolvable:$true] %s1441
          %1447 = dma.vmem_to_hbm [thread:$0]  %s1442, 256, %s1440, %s1412, 128, 128, 8
        $region48: #{tpu_custom_call.1} parent=39 // pred_fallthru
          _
      $region40: #{tpu_custom_call.1} parent=5 // pred_fallthru
        _
      %p1448 = scmp.le.s32.totalorder 2, %s19
      // Predicated region
      $region49: #{tpu_custom_call.1} parent=5 // pred_check
        %p1449 = pneg %p1448
      $region50: #{tpu_custom_call.1} parent=5 // pred_check_branch
        %1451 = sbr.rel (%p1449) target = $region52
      $region51: #{tpu_custom_call.1} parent=5 // pred_region
        %s1452 = ssub.s32 %s19, 2
        // Predicated region
        $region53: #{tpu_custom_call.1} parent=51 // pred_check
          %p1453 = pneg %p158
        $region54: #{tpu_custom_call.1} parent=51 // pred_check_branch
          %1455 = sbr.rel (%p1453) target = $region56
        $region55: #{tpu_custom_call.1} parent=51 // pred_region
          %s1456 = sand.u32 %s143, 1
          %s1457 = scalar_lea.sflag [#allocation3], %s1456
          %s1458 = sand.u32 %s143, 1
          %s1459 = smul.addr %s1458, 16
          %s1460 = scalar_lea.vmem [#allocation2], %s1459
          %1461 = dma.done %s1457, 256
        $region56: #{tpu_custom_call.1} parent=51 // pred_fallthru
          _
        // Predicated region
        $region57: #{tpu_custom_call.1} parent=51 // pred_check
          %p1462 = pneg %p184
        $region58: #{tpu_custom_call.1} parent=51 // pred_check_branch
          %1464 = sbr.rel (%p1462) target = $region60
        $region59: #{tpu_custom_call.1} parent=51 // pred_region
          %s1465 = sand.u32 %s169, 1
          %s1466 = scalar_lea.sflag [#allocation5], %s1465
          %s1467 = sand.u32 %s169, 1
          %s1468 = smul.addr %s1467, 16
          %s1469 = scalar_lea.vmem [#allocation4], %s1468
          %1470 = dma.done %s1466, 256
        $region60: #{tpu_custom_call.1} parent=51 // pred_fallthru
          _
      $region52: #{tpu_custom_call.1} parent=5 // pred_fallthru
        _
    $region6: #{tpu_custom_call.1} parent=1 // loop_footer
      %s23 = sadd.s32 1, %s19
    $region7: #{tpu_custom_call.1} parent=1 // loop_footer_branch
      %18 = sbr.rel target = $region3
    $region8: #{tpu_custom_call.1} parent=1 // loop_exit
      _
    %1471 = vsyncpa [#allocation3], 1
    %s1472 = scalar_lea.sflag [#allocation3], 1
    %1473 = vsyncpa %s1472, 1
    %1474 = vsyncpa [#allocation5], 1
    %s1475 = scalar_lea.sflag [#allocation5], 1
    %1476 = vsyncpa %s1475, 1

</llo_original>
